<compile_context>
chip_gen: v7x
topology: tpu7x:2x2x1
jax: 0.10.0
libtpu: 0.0.40
codegen_flags: <defaults>
</compile_context>

<pallas_src>
import jax
import jax.numpy as jnp
from jax.experimental import pallas as pl
from jax.experimental.pallas import tpu as pltpu

DIM = 312
HID = 2 * DIM          # 624
N_CLASSES = 8          # args.n_classes
BN_EPS = 1e-5

# Lane-padded sizes (multiples of 128).
DIM_PAD = 384
HID_PAD = 640
OUT_PAD = 128


def mlp_kernel(x_ref, w1_ref, vec_ref, w2_hbm, w3_hbm, o_ref,
               w2_vmem, w3_vmem, sem):
    # x: (B, DIM_PAD) bf16 (pre-padded/cast in wrapper); w1: bf16 VMEM;
    # vec: (8, HID_PAD) f32 coalesced vectors; w2/w3: bf16 HBM refs (manual DMA).

    # ---- kick off w2/w3 DMAs so they overlap fc1 + BN1 compute ----
    cp_w2 = pltpu.make_async_copy(w2_hbm, w2_vmem, sem.at[0])
    cp_w3 = pltpu.make_async_copy(w3_hbm, w3_vmem, sem.at[1])
    cp_w2.start()
    cp_w3.start()

    x = x_ref[...]
    v = vec_ref[...]
    b1, g1, be1 = v[0:1, :], v[1:2, :], v[2:3, :]
    b2, g2, be2 = v[3:4, :], v[4:5, :], v[5:6, :]
    b3 = v[6:7, :OUT_PAD]

    # ---- fc1 + ReLU (bf16 MXU, f32 accumulate) ----
    h = jnp.dot(x, w1_ref[...], preferred_element_type=jnp.float32) + b1
    h = jnp.maximum(h, 0.0)

    # ---- BatchNorm1d #1 (training-mode batch stats, biased variance, f32) ----
    mu1 = jnp.mean(h, axis=0, keepdims=True)
    var1 = jnp.maximum(jnp.mean(h * h, axis=0, keepdims=True) - mu1 * mu1, 0.0)
    h = (h - mu1) * jax.lax.rsqrt(var1 + BN_EPS) * g1 + be1

    # ---- fc2 + ReLU (w2 DMA must have landed by now) ----
    cp_w2.wait()
    h = jnp.dot(h.astype(jnp.bfloat16), w2_vmem[...],
                preferred_element_type=jnp.float32) + b2
    h = jnp.maximum(h, 0.0)

    # ---- BatchNorm1d #2 ----
    mu2 = jnp.mean(h, axis=0, keepdims=True)
    var2 = jnp.maximum(jnp.mean(h * h, axis=0, keepdims=True) - mu2 * mu2, 0.0)
    h = (h - mu2) * jax.lax.rsqrt(var2 + BN_EPS) * g2 + be2

    # (dropout == identity)

    # ---- fc3 (padded to OUT_PAD=128 -> unmasked lane-dense store) ----
    cp_w3.wait()
    o_ref[...] = jnp.dot(h.astype(jnp.bfloat16), w3_vmem[...],
                         preferred_element_type=jnp.float32) + b3


def _cost_estimate(B):
    flops = 2 * B * (DIM_PAD * HID_PAD + HID_PAD * HID_PAD + HID_PAD * OUT_PAD)
    bytes_accessed = (
        2 * (DIM_PAD * HID_PAD + HID_PAD * HID_PAD + HID_PAD * OUT_PAD)  # bf16 weights
        + 4 * 8 * HID_PAD                                                # vecs slab
        + 2 * B * DIM_PAD                                                # bf16 x
        + 4 * B * OUT_PAD)                                               # f32 out
    return pl.CostEstimate(flops=flops, transcendentals=2 * HID_PAD,
                           bytes_accessed=bytes_accessed)


def mlp_pallas_padded(x_pad, packed):
    """x_pad: (B, DIM_PAD) bf16 (already lane-padded + cast). Returns (B, OUT_PAD) f32."""
    B = x_pad.shape[0]
    vmem = pl.BlockSpec(memory_space=pltpu.MemorySpace.VMEM)
    hbm = pl.BlockSpec(memory_space=pl.ANY)
    return pl.pallas_call(
        mlp_kernel,
        out_shape=jax.ShapeDtypeStruct((B, OUT_PAD), jnp.float32),
        in_specs=[vmem, vmem, vmem, hbm, hbm],
        out_specs=vmem,
        scratch_shapes=[
            pltpu.VMEM((HID_PAD, HID_PAD), jnp.bfloat16),   # w2 landing buffer
            pltpu.VMEM((HID_PAD, OUT_PAD), jnp.bfloat16),   # w3 landing buffer
            pltpu.SemaphoreType.DMA((2,)),
        ],
        cost_estimate=_cost_estimate(B),
    )(x_pad, packed["w1"], packed["vecs"], packed["w2"], packed["w3"])


@jax.jit
def mlp_forward(metadata, packed):
    # One-time (per call) pad + bf16 cast on the wrapper side; XLA fuses these
    # around the custom call thanks to the attached cost estimate.
    x_pad = jnp.pad(metadata.astype(jnp.bfloat16),
                    ((0, 0), (0, DIM_PAD - DIM)))
    out = mlp_pallas_padded(x_pad, packed)
    return out[:, :N_CLASSES]


# ----------------------------------------------------------------------------
# Parameter construction / packing / reference
# ----------------------------------------------------------------------------
def init_params(key):
    """Raw f32 parameters in PyTorch-equivalent (unpadded) shapes."""
    ks = jax.random.split(key, 3)

    def lin(k, fan_in, fan_out):
        bound = 1.0 / (fan_in ** 0.5)
        kw, kb = jax.random.split(k)
        w = jax.random.uniform(kw, (fan_in, fan_out), jnp.float32, -bound, bound)
        b = jax.random.uniform(kb, (fan_out,), jnp.float32, -bound, bound)
        return w, b

    w1, b1 = lin(ks[0], DIM, HID)
    w2, b2 = lin(ks[1], HID, HID)
    w3, b3 = lin(ks[2], HID, N_CLASSES)
    return {
        "w1": w1, "b1": b1,
        "g1": jnp.ones((HID,), jnp.float32), "be1": jnp.zeros((HID,), jnp.float32),
        "w2": w2, "b2": b2,
        "g2": jnp.ones((HID,), jnp.float32), "be2": jnp.zeros((HID,), jnp.float32),
        "w3": w3, "b3": b3,
    }


def pack_params(raw):
    """Zero-pad to lane multiples, quantize weights to bf16, and coalesce the
    small per-feature vectors into one (8, HID_PAD) f32 slab.  Padding is safe:
    padded weight rows/cols, biases, gamma, beta are exactly 0, and BatchNorm1d
    reduces over the batch axis, so real-feature stats are unaffected."""
    def pad2(w, rows, cols):
        return jnp.zeros((rows, cols), jnp.float32).at[:w.shape[0], :w.shape[1]].set(w)

    def pad1(v, n):
        return jnp.zeros((n,), jnp.float32).at[:v.shape[0]].set(v)

    vecs = jnp.stack([
        pad1(raw["b1"], HID_PAD), pad1(raw["g1"], HID_PAD), pad1(raw["be1"], HID_PAD),
        pad1(raw["b2"], HID_PAD), pad1(raw["g2"], HID_PAD), pad1(raw["be2"], HID_PAD),
        pad1(raw["b3"], HID_PAD), jnp.zeros((HID_PAD,), jnp.float32),
    ], axis=0)
    return {
        "w1": pad2(raw["w1"], DIM_PAD, HID_PAD).astype(jnp.bfloat16),
        "w2": pad2(raw["w2"], HID_PAD, HID_PAD).astype(jnp.bfloat16),
        "w3": pad2(raw["w3"], HID_PAD, OUT_PAD).astype(jnp.bfloat16),
        "vecs": vecs,
    }


def mlp_reference(metadata, raw):
    """Pure-JAX reference with the same numerics (bf16 weights, f32 accumulate,
    training-mode batch stats, dropout identity)."""
    def mm(x, w):
        return jnp.dot(x.astype(jnp.bfloat16), w.astype(jnp.bfloat16),
                       preferred_element_type=jnp.float32)

    h = jnp.maximum(mm(metadata, raw["w1"]) + raw["b1"], 0.0)
    mu = h.mean(0, keepdims=True)
    var = jnp.maximum((h * h).mean(0, keepdims=True) - mu * mu, 0.0)
    h = (h - mu) * jax.lax.rsqrt(var + BN_EPS) * raw["g1"] + raw["be1"]

    h = jnp.maximum(mm(h, raw["w2"]) + raw["b2"], 0.0)
    mu = h.mean(0, keepdims=True)
    var = jnp.maximum((h * h).mean(0, keepdims=True) - mu * mu, 0.0)
    h = (h - mu) * jax.lax.rsqrt(var + BN_EPS) * raw["g2"] + raw["be2"]

    return mm(h, raw["w3"]) + raw["b3"]


class MLP:
    """Mirrors the PyTorch module's forward signature; only `metadata` is used."""

    def __init__(self, raw_params):
        self.raw = raw_params
        self.packed = pack_params(raw_params)

    def forward(self, txt, mask, segment, img, poster, metadata):
        return mlp_forward(metadata, self.packed)


if __name__ == "__main__":
    key = jax.random.PRNGKey(0)
    kp, kx = jax.random.split(key)
    raw_params = init_params(kp)

    B = 8
    metadata = jax.random.normal(kx, (B, DIM), jnp.float32)
    # Unused forward args (kept for signature parity with the PyTorch module).
    txt = mask = segment = img = poster = None

    model = MLP(raw_params)
    out = model.forward(txt, mask, segment, img, poster, metadata)
    out = jax.block_until_ready(out)

    ref = mlp_reference(metadata, raw_params)
    assert out.shape == (B, N_CLASSES)
    assert jnp.allclose(out, ref, atol=2e-3, rtol=2e-3), "mismatch vs reference"
    print("KERNEL_OK")
</pallas_src>

<mosaic_0001>
module attributes {stable_mosaic.version = 11 : i64} {
  func.func @mlp_kernel(%arg0: memref<8x384xbf16, #tpu.memory_space<vmem>>, %arg1: memref<384x640xbf16, #tpu.memory_space<vmem>>, %arg2: memref<8x640xf32, #tpu.memory_space<vmem>>, %arg3: memref<640x640xbf16, #tpu.memory_space<any>>, %arg4: memref<640x128xbf16, #tpu.memory_space<any>>, %arg5: memref<8x128xf32, #tpu.memory_space<vmem>>, %arg6: memref<640x640xbf16, #tpu.memory_space<vmem>>, %arg7: memref<640x128xbf16, #tpu.memory_space<vmem>>, %arg8: memref<2x!tpu.dma_semaphore, #tpu.memory_space<semaphore_mem>>) attributes {dimension_semantics = [], scalar_prefetch = 0 : i64, scratch_operands = 3 : i64, tpu.core_type = #tpu.core_type<tc>} {
    %c0_i32 = arith.constant 0 : i32
    %0 = tpu.memref_slice %arg8[%c0_i32] : memref<2x!tpu.dma_semaphore, #tpu.memory_space<semaphore_mem>> -> memref<1x!tpu.dma_semaphore, #tpu.memory_space<semaphore_mem>>
    %1 = tpu.memref_squeeze %0 : memref<1x!tpu.dma_semaphore, #tpu.memory_space<semaphore_mem>> -> memref<!tpu.dma_semaphore, #tpu.memory_space<semaphore_mem>>
    tpu.enqueue_dma source(%arg3 : memref<640x640xbf16, #tpu.memory_space<any>>) target(%arg6 : memref<640x640xbf16, #tpu.memory_space<vmem>>) target_semaphore(%1 : memref<!tpu.dma_semaphore, #tpu.memory_space<semaphore_mem>>)
    %c1_i32 = arith.constant 1 : i32
    %2 = tpu.memref_slice %arg8[%c1_i32] : memref<2x!tpu.dma_semaphore, #tpu.memory_space<semaphore_mem>> -> memref<1x!tpu.dma_semaphore, #tpu.memory_space<semaphore_mem>>
    %3 = tpu.memref_squeeze %2 : memref<1x!tpu.dma_semaphore, #tpu.memory_space<semaphore_mem>> -> memref<!tpu.dma_semaphore, #tpu.memory_space<semaphore_mem>>
    tpu.enqueue_dma source(%arg4 : memref<640x128xbf16, #tpu.memory_space<any>>) target(%arg7 : memref<640x128xbf16, #tpu.memory_space<vmem>>) target_semaphore(%3 : memref<!tpu.dma_semaphore, #tpu.memory_space<semaphore_mem>>)
    %c0 = arith.constant 0 : index
    %c0_0 = arith.constant 0 : index
    %4 = vector.load %arg0[%c0, %c0_0] : memref<8x384xbf16, #tpu.memory_space<vmem>>, vector<8x384xbf16>
    %c0_1 = arith.constant 0 : index
    %c0_2 = arith.constant 0 : index
    %5 = vector.load %arg2[%c0_1, %c0_2] : memref<8x640xf32, #tpu.memory_space<vmem>>, vector<8x640xf32>
    %6 = vector.extract_strided_slice %5 {offsets = [0, 0], sizes = [1, 640], strides = [1, 1]} : vector<8x640xf32> to vector<1x640xf32>
    %7 = vector.extract_strided_slice %5 {offsets = [1, 0], sizes = [1, 640], strides = [1, 1]} : vector<8x640xf32> to vector<1x640xf32>
    %8 = vector.extract_strided_slice %5 {offsets = [2, 0], sizes = [1, 640], strides = [1, 1]} : vector<8x640xf32> to vector<1x640xf32>
    %9 = vector.extract_strided_slice %5 {offsets = [3, 0], sizes = [1, 640], strides = [1, 1]} : vector<8x640xf32> to vector<1x640xf32>
    %10 = vector.extract_strided_slice %5 {offsets = [4, 0], sizes = [1, 640], strides = [1, 1]} : vector<8x640xf32> to vector<1x640xf32>
    %11 = vector.extract_strided_slice %5 {offsets = [5, 0], sizes = [1, 640], strides = [1, 1]} : vector<8x640xf32> to vector<1x640xf32>
    %12 = vector.extract_strided_slice %5 {offsets = [6, 0], sizes = [1, 128], strides = [1, 1]} : vector<8x640xf32> to vector<1x128xf32>
    %c0_3 = arith.constant 0 : index
    %c0_4 = arith.constant 0 : index
    %13 = vector.load %arg1[%c0_3, %c0_4] : memref<384x640xbf16, #tpu.memory_space<vmem>>, vector<384x640xbf16>
    %cst = arith.constant dense<0.000000e+00> : vector<8x640xf32>
    %14 = tpu.matmul %4, %13, %cst {dimension_numbers = #tpu.dot_dimension_numbers<[1], [0], [0], [1], [0, 0, 1, 1], [], []>} : vector<8x384xbf16>, vector<384x640xbf16>, vector<8x640xf32> -> vector<8x640xf32>
    %15 = vector.broadcast %6 : vector<1x640xf32> to vector<8x640xf32>
    %16 = arith.addf %14, %15 : vector<8x640xf32>
    %cst_5 = arith.constant 0.000000e+00 : f32
    %17 = vector.broadcast %cst_5 : f32 to vector<8x640xf32>
    %18 = arith.maximumf %16, %17 : vector<8x640xf32>
    %cst_6 = arith.constant dense<0.000000e+00> : vector<640xf32>
    %19 = vector.multi_reduction <add>, %18, %cst_6 [0] : vector<8x640xf32> to vector<640xf32>
    %20 = vector.shape_cast %19 : vector<640xf32> to vector<1x640xf32>
    %cst_7 = arith.constant 8.000000e+00 : f32
    %21 = vector.broadcast %cst_7 : f32 to vector<1x640xf32>
    %22 = arith.divf %20, %21 : vector<1x640xf32>
    %23 = arith.mulf %18, %18 : vector<8x640xf32>
    %cst_8 = arith.constant dense<0.000000e+00> : vector<640xf32>
    %24 = vector.multi_reduction <add>, %23, %cst_8 [0] : vector<8x640xf32> to vector<640xf32>
    %25 = vector.shape_cast %24 : vector<640xf32> to vector<1x640xf32>
    %cst_9 = arith.constant 8.000000e+00 : f32
    %26 = vector.broadcast %cst_9 : f32 to vector<1x640xf32>
    %27 = arith.divf %25, %26 : vector<1x640xf32>
    %28 = arith.mulf %22, %22 : vector<1x640xf32>
    %29 = arith.subf %27, %28 : vector<1x640xf32>
    %cst_10 = arith.constant 0.000000e+00 : f32
    %30 = vector.broadcast %cst_10 : f32 to vector<1x640xf32>
    %31 = arith.maximumf %29, %30 : vector<1x640xf32>
    %32 = vector.broadcast %22 : vector<1x640xf32> to vector<8x640xf32>
    %33 = arith.subf %18, %32 : vector<8x640xf32>
    %cst_11 = arith.constant 9.99999974E-6 : f32
    %34 = vector.broadcast %cst_11 : f32 to vector<1x640xf32>
    %35 = arith.addf %31, %34 : vector<1x640xf32>
    %36 = math.rsqrt %35 : vector<1x640xf32>
    %37 = vector.broadcast %36 : vector<1x640xf32> to vector<8x640xf32>
    %38 = arith.mulf %33, %37 : vector<8x640xf32>
    %39 = vector.broadcast %7 : vector<1x640xf32> to vector<8x640xf32>
    %40 = arith.mulf %38, %39 : vector<8x640xf32>
    %41 = vector.broadcast %8 : vector<1x640xf32> to vector<8x640xf32>
    %42 = arith.addf %40, %41 : vector<8x640xf32>
    %c0_i32_12 = arith.constant 0 : i32
    %43 = tpu.memref_slice %arg8[%c0_i32_12] : memref<2x!tpu.dma_semaphore, #tpu.memory_space<semaphore_mem>> -> memref<1x!tpu.dma_semaphore, #tpu.memory_space<semaphore_mem>>
    %44 = tpu.memref_squeeze %43 : memref<1x!tpu.dma_semaphore, #tpu.memory_space<semaphore_mem>> -> memref<!tpu.dma_semaphore, #tpu.memory_space<semaphore_mem>>
    tpu.wait_dma2 semaphore(%44 : memref<!tpu.dma_semaphore, #tpu.memory_space<semaphore_mem>>) src(%arg3 : memref<640x640xbf16, #tpu.memory_space<any>>) dst(%arg6 : memref<640x640xbf16, #tpu.memory_space<vmem>>)
    %45 = arith.truncf %42 : vector<8x640xf32> to vector<8x640xbf16>
    %c0_13 = arith.constant 0 : index
    %c0_14 = arith.constant 0 : index
    %46 = vector.load %arg6[%c0_13, %c0_14] : memref<640x640xbf16, #tpu.memory_space<vmem>>, vector<640x640xbf16>
    %cst_15 = arith.constant dense<0.000000e+00> : vector<8x640xf32>
    %47 = tpu.matmul %45, %46, %cst_15 {dimension_numbers = #tpu.dot_dimension_numbers<[1], [0], [0], [1], [0, 0, 1, 1], [], []>} : vector<8x640xbf16>, vector<640x640xbf16>, vector<8x640xf32> -> vector<8x640xf32>
    %48 = vector.broadcast %9 : vector<1x640xf32> to vector<8x640xf32>
    %49 = arith.addf %47, %48 : vector<8x640xf32>
    %cst_16 = arith.constant 0.000000e+00 : f32
    %50 = vector.broadcast %cst_16 : f32 to vector<8x640xf32>
    %51 = arith.maximumf %49, %50 : vector<8x640xf32>
    %cst_17 = arith.constant dense<0.000000e+00> : vector<640xf32>
    %52 = vector.multi_reduction <add>, %51, %cst_17 [0] : vector<8x640xf32> to vector<640xf32>
    %53 = vector.shape_cast %52 : vector<640xf32> to vector<1x640xf32>
    %cst_18 = arith.constant 8.000000e+00 : f32
    %54 = vector.broadcast %cst_18 : f32 to vector<1x640xf32>
    %55 = arith.divf %53, %54 : vector<1x640xf32>
    %56 = arith.mulf %51, %51 : vector<8x640xf32>
    %cst_19 = arith.constant dense<0.000000e+00> : vector<640xf32>
    %57 = vector.multi_reduction <add>, %56, %cst_19 [0] : vector<8x640xf32> to vector<640xf32>
    %58 = vector.shape_cast %57 : vector<640xf32> to vector<1x640xf32>
    %cst_20 = arith.constant 8.000000e+00 : f32
    %59 = vector.broadcast %cst_20 : f32 to vector<1x640xf32>
    %60 = arith.divf %58, %59 : vector<1x640xf32>
    %61 = arith.mulf %55, %55 : vector<1x640xf32>
    %62 = arith.subf %60, %61 : vector<1x640xf32>
    %cst_21 = arith.constant 0.000000e+00 : f32
    %63 = vector.broadcast %cst_21 : f32 to vector<1x640xf32>
    %64 = arith.maximumf %62, %63 : vector<1x640xf32>
    %65 = vector.broadcast %55 : vector<1x640xf32> to vector<8x640xf32>
    %66 = arith.subf %51, %65 : vector<8x640xf32>
    %cst_22 = arith.constant 9.99999974E-6 : f32
    %67 = vector.broadcast %cst_22 : f32 to vector<1x640xf32>
    %68 = arith.addf %64, %67 : vector<1x640xf32>
    %69 = math.rsqrt %68 : vector<1x640xf32>
    %70 = vector.broadcast %69 : vector<1x640xf32> to vector<8x640xf32>
    %71 = arith.mulf %66, %70 : vector<8x640xf32>
    %72 = vector.broadcast %10 : vector<1x640xf32> to vector<8x640xf32>
    %73 = arith.mulf %71, %72 : vector<8x640xf32>
    %74 = vector.broadcast %11 : vector<1x640xf32> to vector<8x640xf32>
    %75 = arith.addf %73, %74 : vector<8x640xf32>
    %c1_i32_23 = arith.constant 1 : i32
    %76 = tpu.memref_slice %arg8[%c1_i32_23] : memref<2x!tpu.dma_semaphore, #tpu.memory_space<semaphore_mem>> -> memref<1x!tpu.dma_semaphore, #tpu.memory_space<semaphore_mem>>
    %77 = tpu.memref_squeeze %76 : memref<1x!tpu.dma_semaphore, #tpu.memory_space<semaphore_mem>> -> memref<!tpu.dma_semaphore, #tpu.memory_space<semaphore_mem>>
    tpu.wait_dma2 semaphore(%77 : memref<!tpu.dma_semaphore, #tpu.memory_space<semaphore_mem>>) src(%arg4 : memref<640x128xbf16, #tpu.memory_space<any>>) dst(%arg7 : memref<640x128xbf16, #tpu.memory_space<vmem>>)
    %78 = arith.truncf %75 : vector<8x640xf32> to vector<8x640xbf16>
    %c0_24 = arith.constant 0 : index
    %c0_25 = arith.constant 0 : index
    %79 = vector.load %arg7[%c0_24, %c0_25] : memref<640x128xbf16, #tpu.memory_space<vmem>>, vector<640x128xbf16>
    %cst_26 = arith.constant dense<0.000000e+00> : vector<8x128xf32>
    %80 = tpu.matmul %78, %79, %cst_26 {dimension_numbers = #tpu.dot_dimension_numbers<[1], [0], [0], [1], [0, 0, 1, 1], [], []>} : vector<8x640xbf16>, vector<640x128xbf16>, vector<8x128xf32> -> vector<8x128xf32>
    %81 = vector.broadcast %12 : vector<1x128xf32> to vector<8x128xf32>
    %82 = arith.addf %80, %81 : vector<8x128xf32>
    %c0_27 = arith.constant 0 : index
    %c0_28 = arith.constant 0 : index
    %83 = vector.load %arg5[%c0_27, %c0_28] : memref<8x128xf32, #tpu.memory_space<vmem>>, vector<8x128xf32>
    tpu.vector_store %arg5[%c0_27, %c0_28], %82 {strides = array<i32>} : memref<8x128xf32, #tpu.memory_space<vmem>>, vector<8x128xf32>,
    return
  }
}

</mosaic_0001>

<llo_original>
// kernel: mlp_forward.1
$region0: #{mlp_forward.1}
  #allocation0 [shape = 'u32[]', space=smem, size = 0x4, offset = 0x4, fixed_abs, tag = 'smem constant byte address 0x4 - core index']
  #allocation1 [shape = 'u32[144,128]{1,0:T(1,128)}', space=vmem, size = 0x12000, scoped, tag = 'internal scratch']
  #allocation2 [shape = 'bf16[640,640]{1,0:T(16,128)(2,1)}', space=vmem, size = 0xc8000, scoped, tag = 'scratch operand']
  #allocation3 [shape = 'bf16[640,128]{1,0:T(16,128)(2,1)}', space=vmem, size = 0x28000, scoped, tag = 'scratch operand']
  #allocation4 [shape = 's32[2]{0}', space=sflag, size = 0x8, scoped, tag = 'scratch operand']
  #allocation9 [shape = 's32[]', space=sflag, size = 0x4, offset = 0, fixed_abs, tag = 'sflag constant byte address 0x0 - dummy sync flag']
  #allocation11 [shape = 's32[]', space=sflag, size = 0x4, offset = 0, fixed_abs, tag = 'sflag constant byte address 0x0 - dummy sync flag']
  #allocation12 [shape = 's32[]', space=sflag, size = 0x4, offset = 0, fixed_abs, tag = 'sflag constant byte address 0x0 - dummy sync flag']
  #allocation13 [shape = 'u32[]', space=smem, size = 0x4, offset = 0x44, fixed_abs, tag = 'smem constant byte address 0x44 - assertion arg 0']
  #allocation14 [shape = 'u32[]', space=smem, size = 0x4, offset = 0x48, fixed_abs, tag = 'smem constant byte address 0x48 - assertion arg 1']
  %s0 = inlined_call_operand.vmem [shape: bf16[8,384], index: 0, kind: input, shape index: {}]
  %s1 = inlined_call_operand.hbm [shape: bf16[384,640], index: 1, kind: input, shape index: {}]
  %s2 = inlined_call_operand.vmem [shape: f32[8,640], index: 2, kind: input, shape index: {}]
  %s3 = inlined_call_operand.hbm [shape: bf16[640,640], index: 3, kind: input, shape index: {}]
  %s4 = inlined_call_operand.hbm [shape: bf16[640,128], index: 4, kind: input, shape index: {}]
  %s5 = inlined_call_operand.hbm [shape: f32[8,128], index: 5, kind: output, shape index: {}]
  %s6 = sld [smem:[#allocation0]]
  $region30: #{mlp_forward.1} parent=0
    _
  %s8 = ssub.s32 1, %s6
  %s9 = scalar_select 0, %s8, %s6
  $region1: #{mlp_forward.1} parent=0
    #allocation5 [shape = 'u8[491520]{0}', space=vmem, size = 0x78000, scoped, tag = 'input window, operand 1, single buffered']
    #allocation6 [shape = 's32[1]{0}', space=sflag, size = 0x4, scoped, tag = 'scoped memory for mlp_forward.1']
    #allocation7 [shape = 's32[1]{0}', space=sflag, size = 0x4, scoped, tag = 'scoped memory for mlp_forward.1']
    #allocation8 [shape = 'u8[4096]{0}', space=vmem, size = 0x1000, scoped, tag = 'output window, operand 0, single buffered']
    #allocation10 [shape = 'u32[9]{0}', space=smem, size = 0x24, scoped, tag = 'DMA stride descriptor']
    %10 = vsyncpa [#allocation6], 0
    %11 = vsyncpa [#allocation7], 0
    // Predicated region
    $region2: #{mlp_forward.1} parent=1 // pred_check
      _
    $region3: #{mlp_forward.1} parent=1 // pred_check_branch
      %13 = sbr.rel (0) target = $region5
    $region4: #{mlp_forward.1} parent=1 // pred_region
      _
    $region5: #{mlp_forward.1} parent=1 // pred_fallthru
      _
    // Predicated region
    $region6: #{mlp_forward.1} parent=1 // pred_check
      _
    $region7: #{mlp_forward.1} parent=1 // pred_check_branch
      %15 = sbr.rel (0) target = $region9
    $region8: #{mlp_forward.1} parent=1 // pred_region
      %s17 = ssub.s32 15360, 15360
      %18 = vsyncadd [#allocation6], %s17
      %s19 = sshll.u32 [#allocation5], 4
      %s20 = int_to_ptr.vmem [resolvable:$true] %s19
      %25 = dma.hbm_to_vmem [thread:$0]  %s1, 15360, %s20, [#allocation6], 320, 320, 20
    $region9: #{mlp_forward.1} parent=1 // pred_fallthru
      _
    // Predicated region
    $region10: #{mlp_forward.1} parent=1 // pred_check
      _
    $region11: #{mlp_forward.1} parent=1 // pred_check_branch
      %27 = sbr.rel (0) target = $region13
    $region12: #{mlp_forward.1} parent=1 // pred_region
      _
    $region13: #{mlp_forward.1} parent=1 // pred_fallthru
      _
    // Predicated region
    $region14: #{mlp_forward.1} parent=1 // pred_check
      _
    $region15: #{mlp_forward.1} parent=1 // pred_check_branch
      %29 = sbr.rel (0) target = $region17
    $region16: #{mlp_forward.1} parent=1 // pred_region
      %30 = dma.done [#allocation6], 15360
    $region17: #{mlp_forward.1} parent=1 // pred_fallthru
      _
    %s33 = sshll.u32 1, 14
    %s34 = sxor.u32 4294967295, %s33
    %s36 = sld [smem:[#allocation0]]
    %s37 = sadd.s32 2, %s36
    %s39 = sshll.u32 7, 26
    %s40 = sxor.u32 4294967295, %s39
    %s41 = sand.u32 0, %s40
    %s42 = sshll.u32 %s37, 26
    %s43 = sor.u32 %s41, %s42
    %s44 = sshll.u32 [#allocation2], 4
    %s45 = int_to_ptr.vmem [resolvable:$true] %s44
    %48 = sst [smem:[#allocation10]] 640
    %s49 = scalar_lea.smem [#allocation10], 1
    %50 = sst [smem:[%s49]] 640
    %s51 = scalar_lea.smem [#allocation10], 2
    %52 = sst [smem:[%s51]] 5
    %s53 = scalar_lea.smem [#allocation10], 3
    %54 = sst [smem:[%s53]] 64
    %s55 = scalar_lea.smem [#allocation10], 4
    %56 = sst [smem:[%s55]] 128
    %s57 = scalar_lea.smem [#allocation10], 5
    %58 = sst [smem:[%s57]] 2
    %s59 = scalar_lea.smem [#allocation10], 6
    %60 = sst [smem:[%s59]] 320
    %s61 = scalar_lea.smem [#allocation10], 7
    %62 = sst [smem:[%s61]] 64
    %s63 = scalar_lea.smem [#allocation10], 8
    %64 = sst [smem:[%s63]] 4
    %66 = dma.general %s3, 25600, %s45, [#allocation4], [#allocation9], [#allocation10], %s43, 0
    %s67 = scalar_lea.sflag [#allocation4], 1
    // Predicated region
    $region18: #{mlp_forward.1} parent=1 // pred_check
      _
    $region19: #{mlp_forward.1} parent=1 // pred_check_branch
      %69 = sbr.rel target = $region21
    $region20: #{mlp_forward.1} parent=1 // pred_region
      %70 = sst [smem:[#allocation13]] [#allocation12]
      %71 = sst [smem:[#allocation14]] [#allocation11]
    $region21: #{mlp_forward.1} parent=1 // pred_fallthru
      _
    %73 = shalt.err (0)
    %s75 = sshll.u32 [#allocation3], 4
    %s76 = int_to_ptr.vmem [resolvable:$true] %s75
    %78 = dma.hbm_to_vmem [thread:$0]  %s4, 5120, %s76, %s67
    %v79 = vld [vmem:[%s0] sm:$0xff]
    %v80 = vld [vmem:[%s0 + $0x8] sm:$0xf]
    %v81 = vld [vmem:[%s2] sm:$0xff]
    %v82 = vld [vmem:[%s2 + $0x8] sm:$0xff]
    %v83 = vld [vmem:[%s2 + $0x10] sm:$0xff]
    %v84 = vld [vmem:[%s2 + $0x18] sm:$0xff]
    %v85 = vld [vmem:[%s2 + $0x20] sm:$0xff]
    %v86 = vld [vmem:[#allocation5] sm:$0xff]
    %v87 = vld [vmem:[#allocation5 + $0x8] sm:$0xff]
    %v88 = vld [vmem:[#allocation5 + $0x10] sm:$0xf]
    %v89 = vld [vmem:[#allocation5 + $0x14] sm:$0xff]
    %v90 = vld [vmem:[#allocation5 + $0x1c] sm:$0xff]
    %v91 = vld [vmem:[#allocation5 + $0x24] sm:$0xf]
    %v92 = vld [vmem:[#allocation5 + $0x28] sm:$0xff]
    %v93 = vld [vmem:[#allocation5 + $0x30] sm:$0xff]
    %v94 = vld [vmem:[#allocation5 + $0x38] sm:$0xf]
    %v95 = vld [vmem:[#allocation5 + $0x3c] sm:$0xff]
    %v96 = vld [vmem:[#allocation5 + $0x44] sm:$0xff]
    %v97 = vld [vmem:[#allocation5 + $0x4c] sm:$0xf]
    %v98 = vld [vmem:[#allocation5 + $0x50] sm:$0xff]
    %v99 = vld [vmem:[#allocation5 + $0x58] sm:$0xff]
    %v100 = vld [vmem:[#allocation5 + $0x60] sm:$0xf]
    %v101 = vld [vmem:[#allocation5 + $0x64] sm:$0xff]
    %v102 = vld [vmem:[#allocation5 + $0x6c] sm:$0xff]
    %v103 = vld [vmem:[#allocation5 + $0x74] sm:$0xf]
    %v104 = vld [vmem:[#allocation5 + $0x78] sm:$0xff]
    %v105 = vld [vmem:[#allocation5 + $0x80] sm:$0xff]
    %v106 = vld [vmem:[#allocation5 + $0x88] sm:$0xf]
    %v107 = vld [vmem:[#allocation5 + $0x8c] sm:$0xff]
    %v108 = vld [vmem:[#allocation5 + $0x94] sm:$0xff]
    %v109 = vld [vmem:[#allocation5 + $0x9c] sm:$0xf]
    %v110 = vld [vmem:[#allocation5 + $0xa0] sm:$0xff]
    %v111 = vld [vmem:[#allocation5 + $0xa8] sm:$0xff]
    %v112 = vld [vmem:[#allocation5 + $0xb0] sm:$0xf]
    %v113 = vld [vmem:[#allocation5 + $0xb4] sm:$0xff]
    %v114 = vld [vmem:[#allocation5 + $0xbc] sm:$0xff]
    %v115 = vld [vmem:[#allocation5 + $0xc4] sm:$0xf]
    %v116 = vld [vmem:[#allocation5 + $0xc8] sm:$0xff]
    %v117 = vld [vmem:[#allocation5 + $0xd0] sm:$0xff]
    %v118 = vld [vmem:[#allocation5 + $0xd8] sm:$0xf]
    %v119 = vld [vmem:[#allocation5 + $0xdc] sm:$0xff]
    %v120 = vld [vmem:[#allocation5 + $0xe4] sm:$0xff]
    %v121 = vld [vmem:[#allocation5 + $0xec] sm:$0xf]
    %v122 = vld [vmem:[#allocation5 + $0xf0] sm:$0xff]
    %v123 = vld [vmem:[#allocation5 + $0xf8] sm:$0xff]
    %v124 = vld [vmem:[#allocation5 + $0x100] sm:$0xf]
    %v125 = vld [vmem:[#allocation5 + $0x104] sm:$0xff]
    %v126 = vld [vmem:[#allocation5 + $0x10c] sm:$0xff]
    %v127 = vld [vmem:[#allocation5 + $0x114] sm:$0xf]
    %v128 = vld [vmem:[#allocation5 + $0x118] sm:$0xff]
    %v129 = vld [vmem:[#allocation5 + $0x120] sm:$0xff]
    %v130 = vld [vmem:[#allocation5 + $0x128] sm:$0xf]
    %v131 = vld [vmem:[#allocation5 + $0x12c] sm:$0xff]
    %v132 = vld [vmem:[#allocation5 + $0x134] sm:$0xff]
    %v133 = vld [vmem:[#allocation5 + $0x13c] sm:$0xf]
    %v134 = vld [vmem:[#allocation5 + $0x140] sm:$0xff]
    %v135 = vld [vmem:[#allocation5 + $0x148] sm:$0xff]
    %v136 = vld [vmem:[#allocation5 + $0x150] sm:$0xf]
    %v137 = vld [vmem:[#allocation5 + $0x154] sm:$0xff]
    %v138 = vld [vmem:[#allocation5 + $0x15c] sm:$0xff]
    %v139 = vld [vmem:[#allocation5 + $0x164] sm:$0xf]
    %v140 = vld [vmem:[#allocation5 + $0x168] sm:$0xff]
    %v141 = vld [vmem:[#allocation5 + $0x170] sm:$0xff]
    %v142 = vld [vmem:[#allocation5 + $0x178] sm:$0xf]
    %v143 = vld [vmem:[#allocation5 + $0x17c] sm:$0xff]
    %v144 = vld [vmem:[#allocation5 + $0x184] sm:$0xff]
    %v145 = vld [vmem:[#allocation5 + $0x18c] sm:$0xf]
    %v146 = vld [vmem:[#allocation5 + $0x190] sm:$0xff]
    %v147 = vld [vmem:[#allocation5 + $0x198] sm:$0xff]
    %v148 = vld [vmem:[#allocation5 + $0x1a0] sm:$0xf]
    %v149 = vld [vmem:[#allocation5 + $0x1a4] sm:$0xff]
    %v150 = vld [vmem:[#allocation5 + $0x1ac] sm:$0xff]
    %v151 = vld [vmem:[#allocation5 + $0x1b4] sm:$0xf]
    %v152 = vld [vmem:[#allocation5 + $0x1b8] sm:$0xff]
    %v153 = vld [vmem:[#allocation5 + $0x1c0] sm:$0xff]
    %v154 = vld [vmem:[#allocation5 + $0x1c8] sm:$0xf]
    %v155 = vld [vmem:[#allocation5 + $0x1cc] sm:$0xff]
    %v156 = vld [vmem:[#allocation5 + $0x1d4] sm:$0xff]
    %v157 = vld [vmem:[#allocation5 + $0x1dc] sm:$0xf]
    %v158 = vld [vmem:[#allocation5 + $0x1e0] sm:$0xff]
    %v159 = vld [vmem:[#allocation5 + $0x1e8] sm:$0xff]
    %v160 = vld [vmem:[#allocation5 + $0x1f0] sm:$0xf]
    %v161 = vld [vmem:[#allocation5 + $0x1f4] sm:$0xff]
    %v162 = vld [vmem:[#allocation5 + $0x1fc] sm:$0xff]
    %v163 = vld [vmem:[#allocation5 + $0x204] sm:$0xf]
    %v164 = vld [vmem:[#allocation5 + $0x208] sm:$0xff]
    %v165 = vld [vmem:[#allocation5 + $0x210] sm:$0xff]
    %v166 = vld [vmem:[#allocation5 + $0x218] sm:$0xf]
    %v167 = vld [vmem:[#allocation5 + $0x21c] sm:$0xff]
    %v168 = vld [vmem:[#allocation5 + $0x224] sm:$0xff]
    %v169 = vld [vmem:[#allocation5 + $0x22c] sm:$0xf]
    %v170 = vld [vmem:[#allocation5 + $0x230] sm:$0xff]
    %v171 = vld [vmem:[#allocation5 + $0x238] sm:$0xff]
    %v172 = vld [vmem:[#allocation5 + $0x240] sm:$0xf]
    %v173 = vld [vmem:[#allocation5 + $0x244] sm:$0xff]
    %v174 = vld [vmem:[#allocation5 + $0x24c] sm:$0xff]
    %v175 = vld [vmem:[#allocation5 + $0x254] sm:$0xf]
    %v176 = vld [vmem:[#allocation5 + $0x258] sm:$0xff]
    %v177 = vld [vmem:[#allocation5 + $0x260] sm:$0xff]
    %v178 = vld [vmem:[#allocation5 + $0x268] sm:$0xf]
    %v179 = vld [vmem:[#allocation5 + $0x26c] sm:$0xff]
    %v180 = vld [vmem:[#allocation5 + $0x274] sm:$0xff]
    %v181 = vld [vmem:[#allocation5 + $0x27c] sm:$0xf]
    %v182 = vld [vmem:[#allocation5 + $0x280] sm:$0xff]
    %v183 = vld [vmem:[#allocation5 + $0x288] sm:$0xff]
    %v184 = vld [vmem:[#allocation5 + $0x290] sm:$0xf]
    %v185 = vld [vmem:[#allocation5 + $0x294] sm:$0xff]
    %v186 = vld [vmem:[#allocation5 + $0x29c] sm:$0xff]
    %v187 = vld [vmem:[#allocation5 + $0x2a4] sm:$0xf]
    %v188 = vld [vmem:[#allocation5 + $0x2a8] sm:$0xff]
    %v189 = vld [vmem:[#allocation5 + $0x2b0] sm:$0xff]
    %v190 = vld [vmem:[#allocation5 + $0x2b8] sm:$0xf]
    %v191 = vld [vmem:[#allocation5 + $0x2bc] sm:$0xff]
    %v192 = vld [vmem:[#allocation5 + $0x2c4] sm:$0xff]
    %v193 = vld [vmem:[#allocation5 + $0x2cc] sm:$0xf]
    %v194 = vld [vmem:[#allocation5 + $0x2d0] sm:$0xff]
    %v195 = vld [vmem:[#allocation5 + $0x2d8] sm:$0xff]
    %v196 = vld [vmem:[#allocation5 + $0x2e0] sm:$0xf]
    %v197 = vld [vmem:[#allocation5 + $0x2e4] sm:$0xff]
    %v198 = vld [vmem:[#allocation5 + $0x2ec] sm:$0xff]
    %v199 = vld [vmem:[#allocation5 + $0x2f4] sm:$0xf]
    %v200 = vld [vmem:[#allocation5 + $0x2f8] sm:$0xff]
    %v201 = vld [vmem:[#allocation5 + $0x300] sm:$0xff]
    %v202 = vld [vmem:[#allocation5 + $0x308] sm:$0xf]
    %v203 = vld [vmem:[#allocation5 + $0x30c] sm:$0xff]
    %v204 = vld [vmem:[#allocation5 + $0x314] sm:$0xff]
    %v205 = vld [vmem:[#allocation5 + $0x31c] sm:$0xf]
    %v206 = vld [vmem:[#allocation5 + $0x320] sm:$0xff]
    %v207 = vld [vmem:[#allocation5 + $0x328] sm:$0xff]
    %v208 = vld [vmem:[#allocation5 + $0x330] sm:$0xf]
    %v209 = vld [vmem:[#allocation5 + $0x334] sm:$0xff]
    %v210 = vld [vmem:[#allocation5 + $0x33c] sm:$0xff]
    %v211 = vld [vmem:[#allocation5 + $0x344] sm:$0xf]
    %v212 = vld [vmem:[#allocation5 + $0x348] sm:$0xff]
    %v213 = vld [vmem:[#allocation5 + $0x350] sm:$0xff]
    %v214 = vld [vmem:[#allocation5 + $0x358] sm:$0xf]
    %v215 = vld [vmem:[#allocation5 + $0x35c] sm:$0xff]
    %v216 = vld [vmem:[#allocation5 + $0x364] sm:$0xff]
    %v217 = vld [vmem:[#allocation5 + $0x36c] sm:$0xf]
    %v218 = vld [vmem:[#allocation5 + $0x370] sm:$0xff]
    %v219 = vld [vmem:[#allocation5 + $0x378] sm:$0xff]
    %v220 = vld [vmem:[#allocation5 + $0x380] sm:$0xf]
    %v221 = vld [vmem:[#allocation5 + $0x384] sm:$0xff]
    %v222 = vld [vmem:[#allocation5 + $0x38c] sm:$0xff]
    %v223 = vld [vmem:[#allocation5 + $0x394] sm:$0xf]
    %v224 = vld [vmem:[#allocation5 + $0x398] sm:$0xff]
    %v225 = vld [vmem:[#allocation5 + $0x3a0] sm:$0xff]
    %v226 = vld [vmem:[#allocation5 + $0x3a8] sm:$0xf]
    %v227 = vld [vmem:[#allocation5 + $0x3ac] sm:$0xff]
    %v228 = vld [vmem:[#allocation5 + $0x3b4] sm:$0xff]
    %v229 = vld [vmem:[#allocation5 + $0x3bc] sm:$0xf]
    %v230 = vlaneseq
    %v231 = vshrl.u32 %v230, 7
    %v232 = vsub.s32 0, %v231
    %v233 = vrot.slane %v81, %v232
    %v234 = vlaneseq
    %v235 = vshrl.u32 %v234, 7
    %v236 = vsub.s32 0, %v235
    %v237 = vrot.slane %v82, %v236
    %v238 = vlaneseq
    %v239 = vshrl.u32 %v238, 7
    %v240 = vsub.s32 0, %v239
    %v241 = vrot.slane %v83, %v240
    %v242 = vlaneseq
    %v243 = vshrl.u32 %v242, 7
    %v244 = vsub.s32 0, %v243
    %v245 = vrot.slane %v84, %v244
    %v246 = vlaneseq
    %v247 = vshrl.u32 %v246, 7
    %v248 = vsub.s32 0, %v247
    %v249 = vrot.slane %v85, %v248
    %v252 = vunpack.c.l.b16 %v79
    %v253 = vunpack.c.h.b16 %v79
    %v254 = vunpack.c.l.b16 %v80
    %v255 = vpack.c.b16 %v252, %v252
    %v256 = vpack.c.b16 %v253, %v253
    %v257 = vpack.c.b16 %v254, %v254
    %v405 = vunpack.c.l.b16 %v86
    %v406 = vunpack.c.h.b16 %v86
    %v407 = vunpack.c.l.b16 %v87
    %v408 = vunpack.c.h.b16 %v87
    %v409 = vunpack.c.l.b16 %v88
    %v410 = vunpack.c.l.b16 %v89
    %v411 = vunpack.c.h.b16 %v89
    %v412 = vunpack.c.l.b16 %v90
    %v413 = vunpack.c.h.b16 %v90
    %v414 = vunpack.c.l.b16 %v91
    %v415 = vunpack.c.l.b16 %v92
    %v416 = vunpack.c.h.b16 %v92
    %v417 = vunpack.c.l.b16 %v93
    %v418 = vunpack.c.h.b16 %v93
    %v419 = vunpack.c.l.b16 %v94
    %v420 = vunpack.c.l.b16 %v95
    %v421 = vunpack.c.h.b16 %v95
    %v422 = vunpack.c.l.b16 %v96
    %v423 = vunpack.c.h.b16 %v96
    %v424 = vunpack.c.l.b16 %v97
    %v425 = vunpack.c.l.b16 %v98
    %v426 = vunpack.c.h.b16 %v98
    %v427 = vunpack.c.l.b16 %v99
    %v428 = vunpack.c.h.b16 %v99
    %v429 = vunpack.c.l.b16 %v100
    %v430 = vunpack.c.l.b16 %v101
    %v431 = vunpack.c.h.b16 %v101
    %v432 = vunpack.c.l.b16 %v102
    %v433 = vunpack.c.h.b16 %v102
    %v434 = vunpack.c.l.b16 %v103
    %v435 = vunpack.c.l.b16 %v104
    %v436 = vunpack.c.h.b16 %v104
    %v437 = vunpack.c.l.b16 %v105
    %v438 = vunpack.c.h.b16 %v105
    %v439 = vunpack.c.l.b16 %v106
    %v440 = vunpack.c.l.b16 %v107
    %v441 = vunpack.c.h.b16 %v107
    %v442 = vunpack.c.l.b16 %v108
    %v443 = vunpack.c.h.b16 %v108
    %v444 = vunpack.c.l.b16 %v109
    %v445 = vunpack.c.l.b16 %v110
    %v446 = vunpack.c.h.b16 %v110
    %v447 = vunpack.c.l.b16 %v111
    %v448 = vunpack.c.h.b16 %v111
    %v449 = vunpack.c.l.b16 %v112
    %v450 = vunpack.c.l.b16 %v113
    %v451 = vunpack.c.h.b16 %v113
    %v452 = vunpack.c.l.b16 %v114
    %v453 = vunpack.c.h.b16 %v114
    %v454 = vunpack.c.l.b16 %v115
    %v455 = vunpack.c.l.b16 %v116
    %v456 = vunpack.c.h.b16 %v116
    %v457 = vunpack.c.l.b16 %v117
    %v458 = vunpack.c.h.b16 %v117
    %v459 = vunpack.c.l.b16 %v118
    %v460 = vunpack.c.l.b16 %v119
    %v461 = vunpack.c.h.b16 %v119
    %v462 = vunpack.c.l.b16 %v120
    %v463 = vunpack.c.h.b16 %v120
    %v464 = vunpack.c.l.b16 %v121
    %v465 = vunpack.c.l.b16 %v122
    %v466 = vunpack.c.h.b16 %v122
    %v467 = vunpack.c.l.b16 %v123
    %v468 = vunpack.c.h.b16 %v123
    %v469 = vunpack.c.l.b16 %v124
    %v470 = vunpack.c.l.b16 %v125
    %v471 = vunpack.c.h.b16 %v125
    %v472 = vunpack.c.l.b16 %v126
    %v473 = vunpack.c.h.b16 %v126
    %v474 = vunpack.c.l.b16 %v127
    %v475 = vunpack.c.l.b16 %v128
    %v476 = vunpack.c.h.b16 %v128
    %v477 = vunpack.c.l.b16 %v129
    %v478 = vunpack.c.h.b16 %v129
    %v479 = vunpack.c.l.b16 %v130
    %v480 = vunpack.c.l.b16 %v131
    %v481 = vunpack.c.h.b16 %v131
    %v482 = vunpack.c.l.b16 %v132
    %v483 = vunpack.c.h.b16 %v132
    %v484 = vunpack.c.l.b16 %v133
    %v485 = vunpack.c.l.b16 %v134
    %v486 = vunpack.c.h.b16 %v134
    %v487 = vunpack.c.l.b16 %v135
    %v488 = vunpack.c.h.b16 %v135
    %v489 = vunpack.c.l.b16 %v136
    %v490 = vunpack.c.l.b16 %v137
    %v491 = vunpack.c.h.b16 %v137
    %v492 = vunpack.c.l.b16 %v138
    %v493 = vunpack.c.h.b16 %v138
    %v494 = vunpack.c.l.b16 %v139
    %v495 = vunpack.c.l.b16 %v140
    %v496 = vunpack.c.h.b16 %v140
    %v497 = vunpack.c.l.b16 %v141
    %v498 = vunpack.c.h.b16 %v141
    %v499 = vunpack.c.l.b16 %v142
    %v500 = vunpack.c.l.b16 %v143
    %v501 = vunpack.c.h.b16 %v143
    %v502 = vunpack.c.l.b16 %v144
    %v503 = vunpack.c.h.b16 %v144
    %v504 = vunpack.c.l.b16 %v145
    %v505 = vunpack.c.l.b16 %v146
    %v506 = vunpack.c.h.b16 %v146
    %v507 = vunpack.c.l.b16 %v147
    %v508 = vunpack.c.h.b16 %v147
    %v509 = vunpack.c.l.b16 %v148
    %v510 = vunpack.c.l.b16 %v149
    %v511 = vunpack.c.h.b16 %v149
    %v512 = vunpack.c.l.b16 %v150
    %v513 = vunpack.c.h.b16 %v150
    %v514 = vunpack.c.l.b16 %v151
    %v515 = vunpack.c.l.b16 %v152
    %v516 = vunpack.c.h.b16 %v152
    %v517 = vunpack.c.l.b16 %v153
    %v518 = vunpack.c.h.b16 %v153
    %v519 = vunpack.c.l.b16 %v154
    %v520 = vunpack.c.l.b16 %v155
    %v521 = vunpack.c.h.b16 %v155
    %v522 = vunpack.c.l.b16 %v156
    %v523 = vunpack.c.h.b16 %v156
    %v524 = vunpack.c.l.b16 %v157
    %v525 = vunpack.c.l.b16 %v158
    %v526 = vunpack.c.h.b16 %v158
    %v527 = vunpack.c.l.b16 %v159
    %v528 = vunpack.c.h.b16 %v159
    %v529 = vunpack.c.l.b16 %v160
    %v530 = vunpack.c.l.b16 %v161
    %v531 = vunpack.c.h.b16 %v161
    %v532 = vunpack.c.l.b16 %v162
    %v533 = vunpack.c.h.b16 %v162
    %v534 = vunpack.c.l.b16 %v163
    %v535 = vunpack.c.l.b16 %v164
    %v536 = vunpack.c.h.b16 %v164
    %v537 = vunpack.c.l.b16 %v165
    %v538 = vunpack.c.h.b16 %v165
    %v539 = vunpack.c.l.b16 %v166
    %v540 = vunpack.c.l.b16 %v167
    %v541 = vunpack.c.h.b16 %v167
    %v542 = vunpack.c.l.b16 %v168
    %v543 = vunpack.c.h.b16 %v168
    %v544 = vunpack.c.l.b16 %v169
    %v545 = vunpack.c.l.b16 %v170
    %v546 = vunpack.c.h.b16 %v170
    %v547 = vunpack.c.l.b16 %v171
    %v548 = vunpack.c.h.b16 %v171
    %v549 = vunpack.c.l.b16 %v172
    %v550 = vunpack.c.l.b16 %v173
    %v551 = vunpack.c.h.b16 %v173
    %v552 = vunpack.c.l.b16 %v174
    %v553 = vunpack.c.h.b16 %v174
    %v554 = vunpack.c.l.b16 %v175
    %v555 = vunpack.c.l.b16 %v176
    %v556 = vunpack.c.h.b16 %v176
    %v557 = vunpack.c.l.b16 %v177
    %v558 = vunpack.c.h.b16 %v177
    %v559 = vunpack.c.l.b16 %v178
    %v560 = vunpack.c.l.b16 %v179
    %v561 = vunpack.c.h.b16 %v179
    %v562 = vunpack.c.l.b16 %v180
    %v563 = vunpack.c.h.b16 %v180
    %v564 = vunpack.c.l.b16 %v181
    %v565 = vunpack.c.l.b16 %v182
    %v566 = vunpack.c.h.b16 %v182
    %v567 = vunpack.c.l.b16 %v183
    %v568 = vunpack.c.h.b16 %v183
    %v569 = vunpack.c.l.b16 %v184
    %v570 = vunpack.c.l.b16 %v185
    %v571 = vunpack.c.h.b16 %v185
    %v572 = vunpack.c.l.b16 %v186
    %v573 = vunpack.c.h.b16 %v186
    %v574 = vunpack.c.l.b16 %v187
    %v575 = vunpack.c.l.b16 %v188
    %v576 = vunpack.c.h.b16 %v188
    %v577 = vunpack.c.l.b16 %v189
    %v578 = vunpack.c.h.b16 %v189
    %v579 = vunpack.c.l.b16 %v190
    %v580 = vunpack.c.l.b16 %v191
    %v581 = vunpack.c.h.b16 %v191
    %v582 = vunpack.c.l.b16 %v192
    %v583 = vunpack.c.h.b16 %v192
    %v584 = vunpack.c.l.b16 %v193
    %v585 = vunpack.c.l.b16 %v194
    %v586 = vunpack.c.h.b16 %v194
    %v587 = vunpack.c.l.b16 %v195
    %v588 = vunpack.c.h.b16 %v195
    %v589 = vunpack.c.l.b16 %v196
    %v590 = vunpack.c.l.b16 %v197
    %v591 = vunpack.c.h.b16 %v197
    %v592 = vunpack.c.l.b16 %v198
    %v593 = vunpack.c.h.b16 %v198
    %v594 = vunpack.c.l.b16 %v199
    %v595 = vunpack.c.l.b16 %v200
    %v596 = vunpack.c.h.b16 %v200
    %v597 = vunpack.c.l.b16 %v201
    %v598 = vunpack.c.h.b16 %v201
    %v599 = vunpack.c.l.b16 %v202
    %v600 = vunpack.c.l.b16 %v203
    %v601 = vunpack.c.h.b16 %v203
    %v602 = vunpack.c.l.b16 %v204
    %v603 = vunpack.c.h.b16 %v204
    %v604 = vunpack.c.l.b16 %v205
    %v605 = vunpack.c.l.b16 %v206
    %v606 = vunpack.c.h.b16 %v206
    %v607 = vunpack.c.l.b16 %v207
    %v608 = vunpack.c.h.b16 %v207
    %v609 = vunpack.c.l.b16 %v208
    %v610 = vunpack.c.l.b16 %v209
    %v611 = vunpack.c.h.b16 %v209
    %v612 = vunpack.c.l.b16 %v210
    %v613 = vunpack.c.h.b16 %v210
    %v614 = vunpack.c.l.b16 %v211
    %v615 = vunpack.c.l.b16 %v212
    %v616 = vunpack.c.h.b16 %v212
    %v617 = vunpack.c.l.b16 %v213
    %v618 = vunpack.c.h.b16 %v213
    %v619 = vunpack.c.l.b16 %v214
    %v620 = vunpack.c.l.b16 %v215
    %v621 = vunpack.c.h.b16 %v215
    %v622 = vunpack.c.l.b16 %v216
    %v623 = vunpack.c.h.b16 %v216
    %v624 = vunpack.c.l.b16 %v217
    %v625 = vunpack.c.l.b16 %v218
    %v626 = vunpack.c.h.b16 %v218
    %v627 = vunpack.c.l.b16 %v219
    %v628 = vunpack.c.h.b16 %v219
    %v629 = vunpack.c.l.b16 %v220
    %v630 = vunpack.c.l.b16 %v221
    %v631 = vunpack.c.h.b16 %v221
    %v632 = vunpack.c.l.b16 %v222
    %v633 = vunpack.c.h.b16 %v222
    %v634 = vunpack.c.l.b16 %v223
    %v635 = vunpack.c.l.b16 %v224
    %v636 = vunpack.c.h.b16 %v224
    %v637 = vunpack.c.l.b16 %v225
    %v638 = vunpack.c.h.b16 %v225
    %v639 = vunpack.c.l.b16 %v226
    %v640 = vunpack.c.l.b16 %v227
    %v641 = vunpack.c.h.b16 %v227
    %v642 = vunpack.c.l.b16 %v228
    %v643 = vunpack.c.h.b16 %v228
    %v644 = vunpack.c.l.b16 %v229
    %v645 = vpack.c.b16 %v410, %v405
    %v646 = vpack.c.b16 %v411, %v406
    %v647 = vpack.c.b16 %v412, %v407
    %v648 = vpack.c.b16 %v413, %v408
    %v649 = vpack.c.b16 %v414, %v409
    %v650 = vpack.c.b16 %v420, %v415
    %v651 = vpack.c.b16 %v421, %v416
    %v652 = vpack.c.b16 %v422, %v417
    %v653 = vpack.c.b16 %v423, %v418
    %v654 = vpack.c.b16 %v424, %v419
    %v655 = vpack.c.b16 %v430, %v425
    %v656 = vpack.c.b16 %v431, %v426
    %v657 = vpack.c.b16 %v432, %v427
    %v658 = vpack.c.b16 %v433, %v428
    %v659 = vpack.c.b16 %v434, %v429
    %v660 = vpack.c.b16 %v440, %v435
    %v661 = vpack.c.b16 %v441, %v436
    %v662 = vpack.c.b16 %v442, %v437
    %v663 = vpack.c.b16 %v443, %v438
    %v664 = vpack.c.b16 %v444, %v439
    %v665 = vpack.c.b16 %v450, %v445
    %v666 = vpack.c.b16 %v451, %v446
    %v667 = vpack.c.b16 %v452, %v447
    %v668 = vpack.c.b16 %v453, %v448
    %v669 = vpack.c.b16 %v454, %v449
    %v670 = vpack.c.b16 %v460, %v455
    %v671 = vpack.c.b16 %v461, %v456
    %v672 = vpack.c.b16 %v462, %v457
    %v673 = vpack.c.b16 %v463, %v458
    %v674 = vpack.c.b16 %v464, %v459
    %v675 = vpack.c.b16 %v470, %v465
    %v676 = vpack.c.b16 %v471, %v466
    %v677 = vpack.c.b16 %v472, %v467
    %v678 = vpack.c.b16 %v473, %v468
    %v679 = vpack.c.b16 %v474, %v469
    %v680 = vpack.c.b16 %v480, %v475
    %v681 = vpack.c.b16 %v481, %v476
    %v682 = vpack.c.b16 %v482, %v477
    %v683 = vpack.c.b16 %v483, %v478
    %v684 = vpack.c.b16 %v484, %v479
    %v685 = vpack.c.b16 %v490, %v485
    %v686 = vpack.c.b16 %v491, %v486
    %v687 = vpack.c.b16 %v492, %v487
    %v688 = vpack.c.b16 %v493, %v488
    %v689 = vpack.c.b16 %v494, %v489
    %v690 = vpack.c.b16 %v500, %v495
    %v691 = vpack.c.b16 %v501, %v496
    %v692 = vpack.c.b16 %v502, %v497
    %v693 = vpack.c.b16 %v503, %v498
    %v694 = vpack.c.b16 %v504, %v499
    %v695 = vpack.c.b16 %v510, %v505
    %v696 = vpack.c.b16 %v511, %v506
    %v697 = vpack.c.b16 %v512, %v507
    %v698 = vpack.c.b16 %v513, %v508
    %v699 = vpack.c.b16 %v514, %v509
    %v700 = vpack.c.b16 %v520, %v515
    %v701 = vpack.c.b16 %v521, %v516
    %v702 = vpack.c.b16 %v522, %v517
    %v703 = vpack.c.b16 %v523, %v518
    %v704 = vpack.c.b16 %v524, %v519
    %v705 = vpack.c.b16 %v530, %v525
    %v706 = vpack.c.b16 %v531, %v526
    %v707 = vpack.c.b16 %v532, %v527
    %v708 = vpack.c.b16 %v533, %v528
    %v709 = vpack.c.b16 %v534, %v529
    %v710 = vpack.c.b16 %v540, %v535
    %v711 = vpack.c.b16 %v541, %v536
    %v712 = vpack.c.b16 %v542, %v537
    %v713 = vpack.c.b16 %v543, %v538
    %v714 = vpack.c.b16 %v544, %v539
    %v715 = vpack.c.b16 %v550, %v545
    %v716 = vpack.c.b16 %v551, %v546
    %v717 = vpack.c.b16 %v552, %v547
    %v718 = vpack.c.b16 %v553, %v548
    %v719 = vpack.c.b16 %v554, %v549
    %v720 = vpack.c.b16 %v560, %v555
    %v721 = vpack.c.b16 %v561, %v556
    %v722 = vpack.c.b16 %v562, %v557
    %v723 = vpack.c.b16 %v563, %v558
    %v724 = vpack.c.b16 %v564, %v559
    %v725 = vpack.c.b16 %v570, %v565
    %v726 = vpack.c.b16 %v571, %v566
    %v727 = vpack.c.b16 %v572, %v567
    %v728 = vpack.c.b16 %v573, %v568
    %v729 = vpack.c.b16 %v574, %v569
    %v730 = vpack.c.b16 %v580, %v575
    %v731 = vpack.c.b16 %v581, %v576
    %v732 = vpack.c.b16 %v582, %v577
    %v733 = vpack.c.b16 %v583, %v578
    %v734 = vpack.c.b16 %v584, %v579
    %v735 = vpack.c.b16 %v590, %v585
    %v736 = vpack.c.b16 %v591, %v586
    %v737 = vpack.c.b16 %v592, %v587
    %v738 = vpack.c.b16 %v593, %v588
    %v739 = vpack.c.b16 %v594, %v589
    %v740 = vpack.c.b16 %v600, %v595
    %v741 = vpack.c.b16 %v601, %v596
    %v742 = vpack.c.b16 %v602, %v597
    %v743 = vpack.c.b16 %v603, %v598
    %v744 = vpack.c.b16 %v604, %v599
    %v745 = vpack.c.b16 %v610, %v605
    %v746 = vpack.c.b16 %v611, %v606
    %v747 = vpack.c.b16 %v612, %v607
    %v748 = vpack.c.b16 %v613, %v608
    %v749 = vpack.c.b16 %v614, %v609
    %v750 = vpack.c.b16 %v620, %v615
    %v751 = vpack.c.b16 %v621, %v616
    %v752 = vpack.c.b16 %v622, %v617
    %v753 = vpack.c.b16 %v623, %v618
    %v754 = vpack.c.b16 %v624, %v619
    %v755 = vpack.c.b16 %v630, %v625
    %v756 = vpack.c.b16 %v631, %v626
    %v757 = vpack.c.b16 %v632, %v627
    %v758 = vpack.c.b16 %v633, %v628
    %v759 = vpack.c.b16 %v634, %v629
    %v760 = vpack.c.b16 %v640, %v635
    %v761 = vpack.c.b16 %v641, %v636
    %v762 = vpack.c.b16 %v642, %v637
    %v763 = vpack.c.b16 %v643, %v638
    %v764 = vpack.c.b16 %v644, %v639
    %885 = vmatprep.subr.bf16.mxu0 %v646
    %886 = vmatpush1.bf16.msra.mxu0 %v645
    %887 = vmatprep.subr.bf16.mxu0 %v651
    %888 = vmatpush1.bf16.msra.mxu0 %v650
    %889 = vmatprep.subr.bf16.mxu0 %v656
    %890 = vmatpush1.bf16.msra.mxu0 %v655
    %891 = vmatprep.subr.bf16.mxu0 %v661
    %892 = vmatpush1.bf16.msra.mxu0 %v660
    %893 = vmatprep.subr.bf16.mxu0 %v666
    %894 = vmatpush1.bf16.msra.mxu0 %v665
    %895 = vmatprep.subr.bf16.mxu0 %v671
    %896 = vmatpush1.bf16.msra.mxu0 %v670
    %897 = vmatprep.subr.bf16.mxu0 %v676
    %898 = vmatpush1.bf16.msra.mxu0 %v675
    %899 = vmatprep.subr.bf16.mxu0 %v681
    %900 = vmatpush1.bf16.msra.mxu0 %v680
    %901 = vmatprep.subr.bf16.mxu0 %v686
    %902 = vmatpush1.bf16.msra.mxu0 %v685
    %903 = vmatprep.subr.bf16.mxu0 %v691
    %904 = vmatpush1.bf16.msra.mxu0 %v690
    %905 = vmatprep.subr.bf16.mxu0 %v696
    %906 = vmatpush1.bf16.msra.mxu0 %v695
    %907 = vmatprep.subr.bf16.mxu0 %v701
    %908 = vmatpush1.bf16.msra.mxu0 %v700
    %909 = vmatprep.subr.bf16.mxu0 %v706
    %910 = vmatpush1.bf16.msra.mxu0 %v705
    %911 = vmatprep.subr.bf16.mxu0 %v711
    %912 = vmatpush1.bf16.msra.mxu0 %v710
    %913 = vmatprep.subr.bf16.mxu0 %v716
    %914 = vmatpush1.bf16.msra.mxu0 %v715
    %915 = vmatprep.subr.bf16.mxu0 %v721
    %916 = vmatpush1.bf16.msra.mxu0 %v720
    %917 = vmatprep.mubr.bf16.mxu0 %v256
    %918 = vmatmul.mubr.bf16.gmra.mrb[0].mxu0 %v255
    %v919 = vpop.f32.mrb[0].mxu0
    %v920 = vadd.f32 %v233, %v919
    %v921 = vpop.f32.mrb[0].mxu0
    %v922 = vadd.f32 %v237, %v921
    %v923 = vpop.f32.mrb[0].mxu0
    %v924 = vpop.f32.mrb[0].mxu0
    %925 = vdwg.mxu0
    %926 = vmatprep.subr.bf16.mxu0 %v726
    %927 = vmatpush1.bf16.msra.mxu0 %v725
    %928 = vmatprep.subr.bf16.mxu0 %v731
    %929 = vmatpush1.bf16.msra.mxu0 %v730
    %930 = vmatprep.subr.bf16.mxu0 %v736
    %931 = vmatpush1.bf16.msra.mxu0 %v735
    %932 = vmatprep.subr.bf16.mxu0 %v741
    %933 = vmatpush1.bf16.msra.mxu0 %v740
    %934 = vmatprep.subr.bf16.mxu0 %v746
    %935 = vmatpush1.bf16.msra.mxu0 %v745
    %936 = vmatprep.subr.bf16.mxu0 %v751
    %937 = vmatpush1.bf16.msra.mxu0 %v750
    %938 = vmatprep.subr.bf16.mxu0 %v756
    %939 = vmatpush1.bf16.msra.mxu0 %v755
    %940 = vmatprep.subr.bf16.mxu0 %v761
    %941 = vmatpush1.bf16.msra.mxu0 %v760
    %942 = vmatprep.subr.bf16.mxu0 0
    %943 = vmatpush1.bf16.msra.mxu0 0
    %944 = vmatprep.subr.bf16.mxu0 0
    %945 = vmatpush1.bf16.msra.mxu0 0
    %946 = vmatprep.subr.bf16.mxu0 0
    %947 = vmatpush1.bf16.msra.mxu0 0
    %948 = vmatprep.subr.bf16.mxu0 0
    %949 = vmatpush1.bf16.msra.mxu0 0
    %950 = vmatprep.subr.bf16.mxu0 0
    %951 = vmatpush1.bf16.msra.mxu0 0
    %952 = vmatprep.subr.bf16.mxu0 0
    %953 = vmatpush1.bf16.msra.mxu0 0
    %954 = vmatprep.subr.bf16.mxu0 0
    %955 = vmatpush1.bf16.msra.mxu0 0
    %956 = vmatprep.subr.bf16.mxu0 0
    %957 = vmatpush1.bf16.msra.mxu0 0
    %958 = vmatprep.mubr.bf16.mxu0 0
    %959 = vmatmul.mubr.bf16.gmra.mrb[0].mxu0 %v257
    %v960 = vpop.f32.mrb[0].mxu0
    %v961 = vadd.f32 %v920, %v960
    %v962 = vpop.f32.mrb[0].mxu0
    %v963 = vadd.f32 %v922, %v962
    %v964 = vpop.f32.mrb[0].mxu0
    %v965 = vpop.f32.mrb[0].mxu0
    %966 = vdwg.mxu0
    %967 = vmatprep.subr.bf16.mxu0 %v648
    %968 = vmatpush1.bf16.msra.mxu0 %v647
    %969 = vmatprep.subr.bf16.mxu0 %v653
    %970 = vmatpush1.bf16.msra.mxu0 %v652
    %971 = vmatprep.subr.bf16.mxu0 %v658
    %972 = vmatpush1.bf16.msra.mxu0 %v657
    %973 = vmatprep.subr.bf16.mxu0 %v663
    %974 = vmatpush1.bf16.msra.mxu0 %v662
    %975 = vmatprep.subr.bf16.mxu0 %v668
    %976 = vmatpush1.bf16.msra.mxu0 %v667
    %977 = vmatprep.subr.bf16.mxu0 %v673
    %978 = vmatpush1.bf16.msra.mxu0 %v672
    %979 = vmatprep.subr.bf16.mxu0 %v678
    %980 = vmatpush1.bf16.msra.mxu0 %v677
    %981 = vmatprep.subr.bf16.mxu0 %v683
    %982 = vmatpush1.bf16.msra.mxu0 %v682
    %983 = vmatprep.subr.bf16.mxu0 %v688
    %984 = vmatpush1.bf16.msra.mxu0 %v687
    %985 = vmatprep.subr.bf16.mxu0 %v693
    %986 = vmatpush1.bf16.msra.mxu0 %v692
    %987 = vmatprep.subr.bf16.mxu0 %v698
    %988 = vmatpush1.bf16.msra.mxu0 %v697
    %989 = vmatprep.subr.bf16.mxu0 %v703
    %990 = vmatpush1.bf16.msra.mxu0 %v702
    %991 = vmatprep.subr.bf16.mxu0 %v708
    %992 = vmatpush1.bf16.msra.mxu0 %v707
    %993 = vmatprep.subr.bf16.mxu0 %v713
    %994 = vmatpush1.bf16.msra.mxu0 %v712
    %995 = vmatprep.subr.bf16.mxu0 %v718
    %996 = vmatpush1.bf16.msra.mxu0 %v717
    %997 = vmatprep.subr.bf16.mxu0 %v723
    %998 = vmatpush1.bf16.msra.mxu0 %v722
    %999 = vmatprep.mubr.bf16.mxu0 %v256
    %1000 = vmatmul.mubr.bf16.gmra.mrb[0].mxu0 %v255
    %v1001 = vpop.f32.mrb[0].mxu0
    %v1002 = vadd.f32 %v241, %v1001
    %v1003 = vpop.f32.mrb[0].mxu0
    %v1004 = vadd.f32 %v245, %v1003
    %v1005 = vpop.f32.mrb[0].mxu0
    %v1006 = vpop.f32.mrb[0].mxu0
    %1007 = vdwg.mxu0
    %1008 = vmatprep.subr.bf16.mxu0 %v728
    %1009 = vmatpush1.bf16.msra.mxu0 %v727
    %1010 = vmatprep.subr.bf16.mxu0 %v733
    %1011 = vmatpush1.bf16.msra.mxu0 %v732
    %1012 = vmatprep.subr.bf16.mxu0 %v738
    %1013 = vmatpush1.bf16.msra.mxu0 %v737
    %1014 = vmatprep.subr.bf16.mxu0 %v743
    %1015 = vmatpush1.bf16.msra.mxu0 %v742
    %1016 = vmatprep.subr.bf16.mxu0 %v748
    %1017 = vmatpush1.bf16.msra.mxu0 %v747
    %1018 = vmatprep.subr.bf16.mxu0 %v753
    %1019 = vmatpush1.bf16.msra.mxu0 %v752
    %1020 = vmatprep.subr.bf16.mxu0 %v758
    %1021 = vmatpush1.bf16.msra.mxu0 %v757
    %1022 = vmatprep.subr.bf16.mxu0 %v763
    %1023 = vmatpush1.bf16.msra.mxu0 %v762
    %1024 = vmatprep.subr.bf16.mxu0 0
    %1025 = vmatpush1.bf16.msra.mxu0 0
    %1026 = vmatprep.subr.bf16.mxu0 0
    %1027 = vmatpush1.bf16.msra.mxu0 0
    %1028 = vmatprep.subr.bf16.mxu0 0
    %1029 = vmatpush1.bf16.msra.mxu0 0
    %1030 = vmatprep.subr.bf16.mxu0 0
    %1031 = vmatpush1.bf16.msra.mxu0 0
    %1032 = vmatprep.subr.bf16.mxu0 0
    %1033 = vmatpush1.bf16.msra.mxu0 0
    %1034 = vmatprep.subr.bf16.mxu0 0
    %1035 = vmatpush1.bf16.msra.mxu0 0
    %1036 = vmatprep.subr.bf16.mxu0 0
    %1037 = vmatpush1.bf16.msra.mxu0 0
    %1038 = vmatprep.subr.bf16.mxu0 0
    %1039 = vmatpush1.bf16.msra.mxu0 0
    %1040 = vmatprep.mubr.bf16.mxu0 0
    %1041 = vmatmul.mubr.bf16.gmra.mrb[0].mxu0 %v257
    %v1042 = vpop.f32.mrb[0].mxu0
    %v1043 = vadd.f32 %v1002, %v1042
    %v1044 = vpop.f32.mrb[0].mxu0
    %v1045 = vadd.f32 %v1004, %v1044
    %v1046 = vpop.f32.mrb[0].mxu0
    %v1047 = vpop.f32.mrb[0].mxu0
    %1048 = vdwg.mxu0
    %1049 = vmatprep.subr.bf16.mxu0 0
    %1050 = vmatpush1.bf16.msra.mxu0 %v649
    %1051 = vmatprep.subr.bf16.mxu0 0
    %1052 = vmatpush1.bf16.msra.mxu0 %v654
    %1053 = vmatprep.subr.bf16.mxu0 0
    %1054 = vmatpush1.bf16.msra.mxu0 %v659
    %1055 = vmatprep.subr.bf16.mxu0 0
    %1056 = vmatpush1.bf16.msra.mxu0 %v664
    %1057 = vmatprep.subr.bf16.mxu0 0
    %1058 = vmatpush1.bf16.msra.mxu0 %v669
    %1059 = vmatprep.subr.bf16.mxu0 0
    %1060 = vmatpush1.bf16.msra.mxu0 %v674
    %1061 = vmatprep.subr.bf16.mxu0 0
    %1062 = vmatpush1.bf16.msra.mxu0 %v679
    %1063 = vmatprep.subr.bf16.mxu0 0
    %1064 = vmatpush1.bf16.msra.mxu0 %v684
    %1065 = vmatprep.subr.bf16.mxu0 0
    %1066 = vmatpush1.bf16.msra.mxu0 %v689
    %1067 = vmatprep.subr.bf16.mxu0 0
    %1068 = vmatpush1.bf16.msra.mxu0 %v694
    %1069 = vmatprep.subr.bf16.mxu0 0
    %1070 = vmatpush1.bf16.msra.mxu0 %v699
    %1071 = vmatprep.subr.bf16.mxu0 0
    %1072 = vmatpush1.bf16.msra.mxu0 %v704
    %1073 = vmatprep.subr.bf16.mxu0 0
    %1074 = vmatpush1.bf16.msra.mxu0 %v709
    %1075 = vmatprep.subr.bf16.mxu0 0
    %1076 = vmatpush1.bf16.msra.mxu0 %v714
    %1077 = vmatprep.subr.bf16.mxu0 0
    %1078 = vmatpush1.bf16.msra.mxu0 %v719
    %1079 = vmatprep.subr.bf16.mxu0 0
    %1080 = vmatpush1.bf16.msra.mxu0 %v724
    %1081 = vmatprep.mubr.bf16.mxu0 %v256
    %1082 = vmatmul.mubr.bf16.gmra.mrb[0].mxu0 %v255
    %v1083 = vpop.f32.mrb[0].mxu0
    %v1084 = vadd.f32 %v249, %v1083
    %v1085 = vpop.f32.mrb[0].mxu0
    %v1086 = vpop.f32.mrb[0].mxu0
    %v1087 = vpop.f32.mrb[0].mxu0
    %1088 = vdwg.mxu0
    %1089 = vmatprep.subr.bf16.mxu0 0
    %1090 = vmatpush1.bf16.msra.mxu0 %v729
    %1091 = vmatprep.subr.bf16.mxu0 0
    %1092 = vmatpush1.bf16.msra.mxu0 %v734
    %1093 = vmatprep.subr.bf16.mxu0 0
    %1094 = vmatpush1.bf16.msra.mxu0 %v739
    %1095 = vmatprep.subr.bf16.mxu0 0
    %1096 = vmatpush1.bf16.msra.mxu0 %v744
    %1097 = vmatprep.subr.bf16.mxu0 0
    %1098 = vmatpush1.bf16.msra.mxu0 %v749
    %1099 = vmatprep.subr.bf16.mxu0 0
    %1100 = vmatpush1.bf16.msra.mxu0 %v754
    %1101 = vmatprep.subr.bf16.mxu0 0
    %1102 = vmatpush1.bf16.msra.mxu0 %v759
    %1103 = vmatprep.subr.bf16.mxu0 0
    %1104 = vmatpush1.bf16.msra.mxu0 %v764
    %1105 = vmatprep.subr.bf16.mxu0 0
    %1106 = vmatpush1.bf16.msra.mxu0 0
    %1107 = vmatprep.subr.bf16.mxu0 0
    %1108 = vmatpush1.bf16.msra.mxu0 0
    %1109 = vmatprep.subr.bf16.mxu0 0
    %1110 = vmatpush1.bf16.msra.mxu0 0
    %1111 = vmatprep.subr.bf16.mxu0 0
    %1112 = vmatpush1.bf16.msra.mxu0 0
    %1113 = vmatprep.subr.bf16.mxu0 0
    %1114 = vmatpush1.bf16.msra.mxu0 0
    %1115 = vmatprep.subr.bf16.mxu0 0
    %1116 = vmatpush1.bf16.msra.mxu0 0
    %1117 = vmatprep.subr.bf16.mxu0 0
    %1118 = vmatpush1.bf16.msra.mxu0 0
    %1119 = vmatprep.subr.bf16.mxu0 0
    %1120 = vmatpush1.bf16.msra.mxu0 0
    %1121 = vmatprep.mubr.bf16.mxu0 0
    %1122 = vmatmul.mubr.bf16.gmra.mrb[0].mxu0 %v257
    %v1123 = vpop.f32.mrb[0].mxu0
    %v1124 = vadd.f32 %v1084, %v1123
    %v1125 = vpop.f32.mrb[0].mxu0
    %v1126 = vpop.f32.mrb[0].mxu0
    %v1127 = vpop.f32.mrb[0].mxu0
    %1128 = vdwg.mxu0
    %v1129 = vmax.f32 %v961, 0.0
    %v1130 = vmax.f32 %v963, 0.0
    %v1131 = vmax.f32 %v1043, 0.0
    %v1132 = vmax.f32 %v1045, 0.0
    %v1133 = vmax.f32 %v1124, 0.0
    %v1134 = vrot.slane %v1129, 4
    %v1135 = vadd.f32 %v1129, %v1134
    %v1136 = vrot.slane %v1135, 2
    %v1137 = vadd.f32 %v1135, %v1136
    %v1138 = vrot.slane %v1137, 1
    %v1139 = vadd.f32 %v1137, %v1138
    %v1140 = vrot.slane %v1130, 4
    %v1141 = vadd.f32 %v1130, %v1140
    %v1142 = vrot.slane %v1141, 2
    %v1143 = vadd.f32 %v1141, %v1142
    %v1144 = vrot.slane %v1143, 1
    %v1145 = vadd.f32 %v1143, %v1144
    %v1146 = vrot.slane %v1131, 4
    %v1147 = vadd.f32 %v1131, %v1146
    %v1148 = vrot.slane %v1147, 2
    %v1149 = vadd.f32 %v1147, %v1148
    %v1150 = vrot.slane %v1149, 1
    %v1151 = vadd.f32 %v1149, %v1150
    %v1152 = vrot.slane %v1132, 4
    %v1153 = vadd.f32 %v1132, %v1152
    %v1154 = vrot.slane %v1153, 2
    %v1155 = vadd.f32 %v1153, %v1154
    %v1156 = vrot.slane %v1155, 1
    %v1157 = vadd.f32 %v1155, %v1156
    %v1158 = vrot.slane %v1133, 4
    %v1159 = vadd.f32 %v1133, %v1158
    %v1160 = vrot.slane %v1159, 2
    %v1161 = vadd.f32 %v1159, %v1160
    %v1162 = vrot.slane %v1161, 1
    %v1163 = vadd.f32 %v1161, %v1162
    %v1164 = vrcp.pop 8.0
    %v1165 = vmul.f32 %v1139, %v1164
    %v1166 = vmul.f32 %v1145, %v1164
    %v1167 = vmul.f32 %v1151, %v1164
    %v1168 = vmul.f32 %v1157, %v1164
    %v1169 = vmul.f32 %v1163, %v1164
    %v1170 = vmul.f32 %v1129, %v1129
    %v1171 = vmul.f32 %v1130, %v1130
    %v1172 = vmul.f32 %v1131, %v1131
    %v1173 = vmul.f32 %v1132, %v1132
    %v1174 = vmul.f32 %v1133, %v1133
    %v1175 = vrot.slane %v1170, 4
    %v1176 = vadd.f32 %v1170, %v1175
    %v1177 = vrot.slane %v1176, 2
    %v1178 = vadd.f32 %v1176, %v1177
    %v1179 = vrot.slane %v1178, 1
    %v1180 = vadd.f32 %v1178, %v1179
    %v1181 = vrot.slane %v1171, 4
    %v1182 = vadd.f32 %v1171, %v1181
    %v1183 = vrot.slane %v1182, 2
    %v1184 = vadd.f32 %v1182, %v1183
    %v1185 = vrot.slane %v1184, 1
    %v1186 = vadd.f32 %v1184, %v1185
    %v1187 = vrot.slane %v1172, 4
    %v1188 = vadd.f32 %v1172, %v1187
    %v1189 = vrot.slane %v1188, 2
    %v1190 = vadd.f32 %v1188, %v1189
    %v1191 = vrot.slane %v1190, 1
    %v1192 = vadd.f32 %v1190, %v1191
    %v1193 = vrot.slane %v1173, 4
    %v1194 = vadd.f32 %v1173, %v1193
    %v1195 = vrot.slane %v1194, 2
    %v1196 = vadd.f32 %v1194, %v1195
    %v1197 = vrot.slane %v1196, 1
    %v1198 = vadd.f32 %v1196, %v1197
    %v1199 = vrot.slane %v1174, 4
    %v1200 = vadd.f32 %v1174, %v1199
    %v1201 = vrot.slane %v1200, 2
    %v1202 = vadd.f32 %v1200, %v1201
    %v1203 = vrot.slane %v1202, 1
    %v1204 = vadd.f32 %v1202, %v1203
    %v1205 = vmul.f32 %v1180, %v1164
    %v1206 = vmul.f32 %v1186, %v1164
    %v1207 = vmul.f32 %v1192, %v1164
    %v1208 = vmul.f32 %v1198, %v1164
    %v1209 = vmul.f32 %v1204, %v1164
    %v1210 = vmul.f32 %v1165, %v1165
    %v1211 = vmul.f32 %v1166, %v1166
    %v1212 = vmul.f32 %v1167, %v1167
    %v1213 = vmul.f32 %v1168, %v1168
    %v1214 = vmul.f32 %v1169, %v1169
    %v1215 = vsub.f32 %v1205, %v1210
    %v1216 = vsub.f32 %v1206, %v1211
    %v1217 = vsub.f32 %v1207, %v1212
    %v1218 = vsub.f32 %v1208, %v1213
    %v1219 = vsub.f32 %v1209, %v1214
    %v1220 = vmax.f32 %v1215, 0.0
    %v1221 = vmax.f32 %v1216, 0.0
    %v1222 = vmax.f32 %v1217, 0.0
    %v1223 = vmax.f32 %v1218, 0.0
    %v1224 = vmax.f32 %v1219, 0.0
    %v1225 = vsub.f32 %v1129, %v1165
    %v1226 = vsub.f32 %v1130, %v1166
    %v1227 = vsub.f32 %v1131, %v1167
    %v1228 = vsub.f32 %v1132, %v1168
    %v1229 = vsub.f32 %v1133, %v1169
    %v1230 = vadd.f32 %v1220, 1e-05
    %v1231 = vadd.f32 %v1221, 1e-05
    %v1232 = vadd.f32 %v1222, 1e-05
    %v1233 = vadd.f32 %v1223, 1e-05
    %v1234 = vadd.f32 %v1224, 1e-05
    %v1235 = vrsqrt.pop %v1230
    %v1236 = vrsqrt.pop %v1231
    %v1237 = vrsqrt.pop %v1232
    %v1238 = vrsqrt.pop %v1233
    %v1239 = vrsqrt.pop %v1234
    %v1240 = vmul.f32 %v1225, %v1235
    %v1241 = vmul.f32 %v1226, %v1236
    %v1242 = vmul.f32 %v1227, %v1237
    %v1243 = vmul.f32 %v1228, %v1238
    %v1244 = vmul.f32 %v1229, %v1239
    %v1245 = vlaneseq
    %v1246 = vshrl.u32 %v1245, 7
    %v1247 = vsub.s32 1, %v1246
    %v1248 = vrot.slane %v81, %v1247
    %v1249 = vlaneseq
    %v1250 = vshrl.u32 %v1249, 7
    %v1251 = vsub.s32 1, %v1250
    %v1252 = vrot.slane %v82, %v1251
    %v1253 = vlaneseq
    %v1254 = vshrl.u32 %v1253, 7
    %v1255 = vsub.s32 1, %v1254
    %v1256 = vrot.slane %v83, %v1255
    %v1257 = vlaneseq
    %v1258 = vshrl.u32 %v1257, 7
    %v1259 = vsub.s32 1, %v1258
    %v1260 = vrot.slane %v84, %v1259
    %v1261 = vlaneseq
    %v1262 = vshrl.u32 %v1261, 7
    %v1263 = vsub.s32 1, %v1262
    %v1264 = vrot.slane %v85, %v1263
    %v1265 = vmul.f32 %v1240, %v1248
    %v1266 = vmul.f32 %v1241, %v1252
    %v1267 = vmul.f32 %v1242, %v1256
    %v1268 = vmul.f32 %v1243, %v1260
    %v1269 = vmul.f32 %v1244, %v1264
    %v1270 = vlaneseq
    %v1271 = vshrl.u32 %v1270, 7
    %v1272 = vsub.s32 2, %v1271
    %v1273 = vrot.slane %v81, %v1272
    %v1274 = vlaneseq
    %v1275 = vshrl.u32 %v1274, 7
    %v1276 = vsub.s32 2, %v1275
    %v1277 = vrot.slane %v82, %v1276
    %v1278 = vlaneseq
    %v1279 = vshrl.u32 %v1278, 7
    %v1280 = vsub.s32 2, %v1279
    %v1281 = vrot.slane %v83, %v1280
    %v1282 = vlaneseq
    %v1283 = vshrl.u32 %v1282, 7
    %v1284 = vsub.s32 2, %v1283
    %v1285 = vrot.slane %v84, %v1284
    %v1286 = vlaneseq
    %v1287 = vshrl.u32 %v1286, 7
    %v1288 = vsub.s32 2, %v1287
    %v1289 = vrot.slane %v85, %v1288
    %v1290 = vadd.f32 %v1265, %v1273
    %v1291 = vadd.f32 %v1266, %v1277
    %v1292 = vadd.f32 %v1267, %v1281
    %v1293 = vadd.f32 %v1268, %v1285
    %v1294 = vadd.f32 %v1269, %v1289
    %s1295 = smul.u32 4, 80
    %s1296 = smul.u32 %s1295, 5
    %s1297 = sshll.u32 %s1296, 4
    %1298 = dma.done [#allocation4], %s1297
    %v1299 = vpack.c.bf16 %v1290, %v1290
    %v1300 = vpack.c.bf16 %v1291, %v1291
    %v1301 = vpack.c.bf16 %v1292, %v1292
    %v1302 = vpack.c.bf16 %v1293, %v1293
    %v1303 = vpack.c.bf16 %v1294, %v1294
    %v1304 = vld [vmem:[#allocation2] sm:$0xff]
    %v1305 = vld [vmem:[#allocation2 + $0x8] sm:$0xff]
    %v1306 = vld [vmem:[#allocation2 + $0x10] sm:$0xff]
    %v1307 = vld [vmem:[#allocation2 + $0x18] sm:$0xff]
    %v1308 = vld [vmem:[#allocation2 + $0x20] sm:$0xff]
    %v1309 = vld [vmem:[#allocation2 + $0x28] sm:$0xff]
    %v1310 = vld [vmem:[#allocation2 + $0x30] sm:$0xff]
    %v1311 = vld [vmem:[#allocation2 + $0x38] sm:$0xff]
    %v1312 = vld [vmem:[#allocation2 + $0x40] sm:$0xff]
    %v1313 = vld [vmem:[#allocation2 + $0x48] sm:$0xff]
    %v1314 = vld [vmem:[#allocation2 + $0x50] sm:$0xff]
    %v1315 = vld [vmem:[#allocation2 + $0x58] sm:$0xff]
    %v1316 = vld [vmem:[#allocation2 + $0x60] sm:$0xff]
    %v1317 = vld [vmem:[#allocation2 + $0x68] sm:$0xff]
    %v1318 = vld [vmem:[#allocation2 + $0x70] sm:$0xff]
    %v1319 = vld [vmem:[#allocation2 + $0x78] sm:$0xff]
    %v1320 = vld [vmem:[#allocation2 + $0x80] sm:$0xff]
    %v1321 = vld [vmem:[#allocation2 + $0x88] sm:$0xff]
    %v1322 = vld [vmem:[#allocation2 + $0x90] sm:$0xff]
    %v1323 = vld [vmem:[#allocation2 + $0x98] sm:$0xff]
    %v1324 = vld [vmem:[#allocation2 + $0xa0] sm:$0xff]
    %v1325 = vld [vmem:[#allocation2 + $0xa8] sm:$0xff]
    %v1326 = vld [vmem:[#allocation2 + $0xb0] sm:$0xff]
    %v1327 = vld [vmem:[#allocation2 + $0xb8] sm:$0xff]
    %v1328 = vld [vmem:[#allocation2 + $0xc0] sm:$0xff]
    %v1329 = vld [vmem:[#allocation2 + $0xc8] sm:$0xff]
    %v1330 = vld [vmem:[#allocation2 + $0xd0] sm:$0xff]
    %v1331 = vld [vmem:[#allocation2 + $0xd8] sm:$0xff]
    %v1332 = vld [vmem:[#allocation2 + $0xe0] sm:$0xff]
    %v1333 = vld [vmem:[#allocation2 + $0xe8] sm:$0xff]
    %v1334 = vld [vmem:[#allocation2 + $0xf0] sm:$0xff]
    %v1335 = vld [vmem:[#allocation2 + $0xf8] sm:$0xff]
    %v1336 = vld [vmem:[#allocation2 + $0x100] sm:$0xff]
    %v1337 = vld [vmem:[#allocation2 + $0x108] sm:$0xff]
    %v1338 = vld [vmem:[#allocation2 + $0x110] sm:$0xff]
    %v1339 = vld [vmem:[#allocation2 + $0x118] sm:$0xff]
    %v1340 = vld [vmem:[#allocation2 + $0x120] sm:$0xff]
    %v1341 = vld [vmem:[#allocation2 + $0x128] sm:$0xff]
    %v1342 = vld [vmem:[#allocation2 + $0x130] sm:$0xff]
    %v1343 = vld [vmem:[#allocation2 + $0x138] sm:$0xff]
    %v1344 = vld [vmem:[#allocation2 + $0x140] sm:$0xff]
    %v1345 = vld [vmem:[#allocation2 + $0x148] sm:$0xff]
    %v1346 = vld [vmem:[#allocation2 + $0x150] sm:$0xff]
    %v1347 = vld [vmem:[#allocation2 + $0x158] sm:$0xff]
    %v1348 = vld [vmem:[#allocation2 + $0x160] sm:$0xff]
    %v1349 = vld [vmem:[#allocation2 + $0x168] sm:$0xff]
    %v1350 = vld [vmem:[#allocation2 + $0x170] sm:$0xff]
    %v1351 = vld [vmem:[#allocation2 + $0x178] sm:$0xff]
    %v1352 = vld [vmem:[#allocation2 + $0x180] sm:$0xff]
    %v1353 = vld [vmem:[#allocation2 + $0x188] sm:$0xff]
    %v1354 = vld [vmem:[#allocation2 + $0x190] sm:$0xff]
    %v1355 = vld [vmem:[#allocation2 + $0x198] sm:$0xff]
    %v1356 = vld [vmem:[#allocation2 + $0x1a0] sm:$0xff]
    %v1357 = vld [vmem:[#allocation2 + $0x1a8] sm:$0xff]
    %v1358 = vld [vmem:[#allocation2 + $0x1b0] sm:$0xff]
    %v1359 = vld [vmem:[#allocation2 + $0x1b8] sm:$0xff]
    %v1360 = vld [vmem:[#allocation2 + $0x1c0] sm:$0xff]
    %v1361 = vld [vmem:[#allocation2 + $0x1c8] sm:$0xff]
    %v1362 = vld [vmem:[#allocation2 + $0x1d0] sm:$0xff]
    %v1363 = vld [vmem:[#allocation2 + $0x1d8] sm:$0xff]
    %v1364 = vld [vmem:[#allocation2 + $0x1e0] sm:$0xff]
    %v1365 = vld [vmem:[#allocation2 + $0x1e8] sm:$0xff]
    %v1366 = vld [vmem:[#allocation2 + $0x1f0] sm:$0xff]
    %v1367 = vld [vmem:[#allocation2 + $0x1f8] sm:$0xff]
    %v1368 = vld [vmem:[#allocation2 + $0x200] sm:$0xff]
    %v1369 = vld [vmem:[#allocation2 + $0x208] sm:$0xff]
    %v1370 = vld [vmem:[#allocation2 + $0x210] sm:$0xff]
    %v1371 = vld [vmem:[#allocation2 + $0x218] sm:$0xff]
    %v1372 = vld [vmem:[#allocation2 + $0x220] sm:$0xff]
    %v1373 = vld [vmem:[#allocation2 + $0x228] sm:$0xff]
    %v1374 = vld [vmem:[#allocation2 + $0x230] sm:$0xff]
    %v1375 = vld [vmem:[#allocation2 + $0x238] sm:$0xff]
    %v1376 = vld [vmem:[#allocation2 + $0x240] sm:$0xff]
    %v1377 = vld [vmem:[#allocation2 + $0x248] sm:$0xff]
    %v1378 = vld [vmem:[#allocation2 + $0x250] sm:$0xff]
    %v1379 = vld [vmem:[#allocation2 + $0x258] sm:$0xff]
    %v1380 = vld [vmem:[#allocation2 + $0x260] sm:$0xff]
    %v1381 = vld [vmem:[#allocation2 + $0x268] sm:$0xff]
    %v1382 = vld [vmem:[#allocation2 + $0x270] sm:$0xff]
    %v1383 = vld [vmem:[#allocation2 + $0x278] sm:$0xff]
    %v1384 = vld [vmem:[#allocation2 + $0x280] sm:$0xff]
    %v1385 = vld [vmem:[#allocation2 + $0x288] sm:$0xff]
    %v1386 = vld [vmem:[#allocation2 + $0x290] sm:$0xff]
    %v1387 = vld [vmem:[#allocation2 + $0x298] sm:$0xff]
    %v1388 = vld [vmem:[#allocation2 + $0x2a0] sm:$0xff]
    %v1389 = vld [vmem:[#allocation2 + $0x2a8] sm:$0xff]
    %v1390 = vld [vmem:[#allocation2 + $0x2b0] sm:$0xff]
    %v1391 = vld [vmem:[#allocation2 + $0x2b8] sm:$0xff]
    %v1392 = vld [vmem:[#allocation2 + $0x2c0] sm:$0xff]
    %v1393 = vld [vmem:[#allocation2 + $0x2c8] sm:$0xff]
    %v1394 = vld [vmem:[#allocation2 + $0x2d0] sm:$0xff]
    %v1395 = vld [vmem:[#allocation2 + $0x2d8] sm:$0xff]
    %v1396 = vld [vmem:[#allocation2 + $0x2e0] sm:$0xff]
    %v1397 = vld [vmem:[#allocation2 + $0x2e8] sm:$0xff]
    %v1398 = vld [vmem:[#allocation2 + $0x2f0] sm:$0xff]
    %v1399 = vld [vmem:[#allocation2 + $0x2f8] sm:$0xff]
    %v1400 = vld [vmem:[#allocation2 + $0x300] sm:$0xff]
    %v1401 = vld [vmem:[#allocation2 + $0x308] sm:$0xff]
    %v1402 = vld [vmem:[#allocation2 + $0x310] sm:$0xff]
    %v1403 = vld [vmem:[#allocation2 + $0x318] sm:$0xff]
    %v1404 = vld [vmem:[#allocation2 + $0x320] sm:$0xff]
    %v1405 = vld [vmem:[#allocation2 + $0x328] sm:$0xff]
    %v1406 = vld [vmem:[#allocation2 + $0x330] sm:$0xff]
    %v1407 = vld [vmem:[#allocation2 + $0x338] sm:$0xff]
    %v1408 = vld [vmem:[#allocation2 + $0x340] sm:$0xff]
    %v1409 = vld [vmem:[#allocation2 + $0x348] sm:$0xff]
    %v1410 = vld [vmem:[#allocation2 + $0x350] sm:$0xff]
    %v1411 = vld [vmem:[#allocation2 + $0x358] sm:$0xff]
    %v1412 = vld [vmem:[#allocation2 + $0x360] sm:$0xff]
    %v1413 = vld [vmem:[#allocation2 + $0x368] sm:$0xff]
    %v1414 = vld [vmem:[#allocation2 + $0x370] sm:$0xff]
    %v1415 = vld [vmem:[#allocation2 + $0x378] sm:$0xff]
    %v1416 = vld [vmem:[#allocation2 + $0x380] sm:$0xff]
    %v1417 = vld [vmem:[#allocation2 + $0x388] sm:$0xff]
    %v1418 = vld [vmem:[#allocation2 + $0x390] sm:$0xff]
    %v1419 = vld [vmem:[#allocation2 + $0x398] sm:$0xff]
    %v1420 = vld [vmem:[#allocation2 + $0x3a0] sm:$0xff]
    %v1421 = vld [vmem:[#allocation2 + $0x3a8] sm:$0xff]
    %v1422 = vld [vmem:[#allocation2 + $0x3b0] sm:$0xff]
    %v1423 = vld [vmem:[#allocation2 + $0x3b8] sm:$0xff]
    %v1424 = vld [vmem:[#allocation2 + $0x3c0] sm:$0xff]
    %v1425 = vld [vmem:[#allocation2 + $0x3c8] sm:$0xff]
    %v1426 = vld [vmem:[#allocation2 + $0x3d0] sm:$0xff]
    %v1427 = vld [vmem:[#allocation2 + $0x3d8] sm:$0xff]
    %v1428 = vld [vmem:[#allocation2 + $0x3e0] sm:$0xff]
    %v1429 = vld [vmem:[#allocation2 + $0x3e8] sm:$0xff]
    %v1430 = vld [vmem:[#allocation2 + $0x3f0] sm:$0xff]
    %v1431 = vld [vmem:[#allocation2 + $0x3f8] sm:$0xff]
    %v1432 = vld [vmem:[#allocation2 + $0x400] sm:$0xff]
    %v1433 = vld [vmem:[#allocation2 + $0x408] sm:$0xff]
    %v1434 = vld [vmem:[#allocation2 + $0x410] sm:$0xff]
    %v1435 = vld [vmem:[#allocation2 + $0x418] sm:$0xff]
    %v1436 = vld [vmem:[#allocation2 + $0x420] sm:$0xff]
    %v1437 = vld [vmem:[#allocation2 + $0x428] sm:$0xff]
    %v1438 = vld [vmem:[#allocation2 + $0x430] sm:$0xff]
    %v1439 = vld [vmem:[#allocation2 + $0x438] sm:$0xff]
    %v1440 = vld [vmem:[#allocation2 + $0x440] sm:$0xff]
    %v1441 = vld [vmem:[#allocation2 + $0x448] sm:$0xff]
    %v1442 = vld [vmem:[#allocation2 + $0x450] sm:$0xff]
    %v1443 = vld [vmem:[#allocation2 + $0x458] sm:$0xff]
    %v1444 = vld [vmem:[#allocation2 + $0x460] sm:$0xff]
    %v1445 = vld [vmem:[#allocation2 + $0x468] sm:$0xff]
    %v1446 = vld [vmem:[#allocation2 + $0x470] sm:$0xff]
    %v1447 = vld [vmem:[#allocation2 + $0x478] sm:$0xff]
    %v1448 = vld [vmem:[#allocation2 + $0x480] sm:$0xff]
    %v1449 = vld [vmem:[#allocation2 + $0x488] sm:$0xff]
    %v1450 = vld [vmem:[#allocation2 + $0x490] sm:$0xff]
    %v1451 = vld [vmem:[#allocation2 + $0x498] sm:$0xff]
    %v1452 = vld [vmem:[#allocation2 + $0x4a0] sm:$0xff]
    %v1453 = vld [vmem:[#allocation2 + $0x4a8] sm:$0xff]
    %v1454 = vld [vmem:[#allocation2 + $0x4b0] sm:$0xff]
    %v1455 = vld [vmem:[#allocation2 + $0x4b8] sm:$0xff]
    %v1456 = vld [vmem:[#allocation2 + $0x4c0] sm:$0xff]
    %v1457 = vld [vmem:[#allocation2 + $0x4c8] sm:$0xff]
    %v1458 = vld [vmem:[#allocation2 + $0x4d0] sm:$0xff]
    %v1459 = vld [vmem:[#allocation2 + $0x4d8] sm:$0xff]
    %v1460 = vld [vmem:[#allocation2 + $0x4e0] sm:$0xff]
    %v1461 = vld [vmem:[#allocation2 + $0x4e8] sm:$0xff]
    %v1462 = vld [vmem:[#allocation2 + $0x4f0] sm:$0xff]
    %v1463 = vld [vmem:[#allocation2 + $0x4f8] sm:$0xff]
    %v1464 = vld [vmem:[#allocation2 + $0x500] sm:$0xff]
    %v1465 = vld [vmem:[#allocation2 + $0x508] sm:$0xff]
    %v1466 = vld [vmem:[#allocation2 + $0x510] sm:$0xff]
    %v1467 = vld [vmem:[#allocation2 + $0x518] sm:$0xff]
    %v1468 = vld [vmem:[#allocation2 + $0x520] sm:$0xff]
    %v1469 = vld [vmem:[#allocation2 + $0x528] sm:$0xff]
    %v1470 = vld [vmem:[#allocation2 + $0x530] sm:$0xff]
    %v1471 = vld [vmem:[#allocation2 + $0x538] sm:$0xff]
    %v1472 = vld [vmem:[#allocation2 + $0x540] sm:$0xff]
    %v1473 = vld [vmem:[#allocation2 + $0x548] sm:$0xff]
    %v1474 = vld [vmem:[#allocation2 + $0x550] sm:$0xff]
    %v1475 = vld [vmem:[#allocation2 + $0x558] sm:$0xff]
    %v1476 = vld [vmem:[#allocation2 + $0x560] sm:$0xff]
    %v1477 = vld [vmem:[#allocation2 + $0x568] sm:$0xff]
    %v1478 = vld [vmem:[#allocation2 + $0x570] sm:$0xff]
    %v1479 = vld [vmem:[#allocation2 + $0x578] sm:$0xff]
    %v1480 = vld [vmem:[#allocation2 + $0x580] sm:$0xff]
    %v1481 = vld [vmem:[#allocation2 + $0x588] sm:$0xff]
    %v1482 = vld [vmem:[#allocation2 + $0x590] sm:$0xff]
    %v1483 = vld [vmem:[#allocation2 + $0x598] sm:$0xff]
    %v1484 = vld [vmem:[#allocation2 + $0x5a0] sm:$0xff]
    %v1485 = vld [vmem:[#allocation2 + $0x5a8] sm:$0xff]
    %v1486 = vld [vmem:[#allocation2 + $0x5b0] sm:$0xff]
    %v1487 = vld [vmem:[#allocation2 + $0x5b8] sm:$0xff]
    %v1488 = vld [vmem:[#allocation2 + $0x5c0] sm:$0xff]
    %v1489 = vld [vmem:[#allocation2 + $0x5c8] sm:$0xff]
    %v1490 = vld [vmem:[#allocation2 + $0x5d0] sm:$0xff]
    %v1491 = vld [vmem:[#allocation2 + $0x5d8] sm:$0xff]
    %v1492 = vld [vmem:[#allocation2 + $0x5e0] sm:$0xff]
    %v1493 = vld [vmem:[#allocation2 + $0x5e8] sm:$0xff]
    %v1494 = vld [vmem:[#allocation2 + $0x5f0] sm:$0xff]
    %v1495 = vld [vmem:[#allocation2 + $0x5f8] sm:$0xff]
    %v1496 = vld [vmem:[#allocation2 + $0x600] sm:$0xff]
    %v1497 = vld [vmem:[#allocation2 + $0x608] sm:$0xff]
    %v1498 = vld [vmem:[#allocation2 + $0x610] sm:$0xff]
    %v1499 = vld [vmem:[#allocation2 + $0x618] sm:$0xff]
    %v1500 = vld [vmem:[#allocation2 + $0x620] sm:$0xff]
    %v1501 = vld [vmem:[#allocation2 + $0x628] sm:$0xff]
    %v1502 = vld [vmem:[#allocation2 + $0x630] sm:$0xff]
    %v1503 = vld [vmem:[#allocation2 + $0x638] sm:$0xff]
    %v1504 = vlaneseq
    %v1505 = vshrl.u32 %v1504, 7
    %v1506 = vsub.s32 3, %v1505
    %v1507 = vrot.slane %v81, %v1506
    %v1508 = vlaneseq
    %v1509 = vshrl.u32 %v1508, 7
    %v1510 = vsub.s32 3, %v1509
    %v1511 = vrot.slane %v82, %v1510
    %v1512 = vlaneseq
    %v1513 = vshrl.u32 %v1512, 7
    %v1514 = vsub.s32 3, %v1513
    %v1515 = vrot.slane %v83, %v1514
    %v1516 = vlaneseq
    %v1517 = vshrl.u32 %v1516, 7
    %v1518 = vsub.s32 3, %v1517
    %v1519 = vrot.slane %v84, %v1518
    %v1520 = vlaneseq
    %v1521 = vshrl.u32 %v1520, 7
    %v1522 = vsub.s32 3, %v1521
    %v1523 = vrot.slane %v85, %v1522
    %1524 = vmatprep.subr.bf16.mxu0 %v1305
    %1525 = vmatpush1.bf16.msra.mxu0 %v1304
    %1526 = vmatprep.subr.bf16.mxu0 %v1310
    %1527 = vmatpush1.bf16.msra.mxu0 %v1309
    %1528 = vmatprep.subr.bf16.mxu0 %v1315
    %1529 = vmatpush1.bf16.msra.mxu0 %v1314
    %1530 = vmatprep.subr.bf16.mxu0 %v1320
    %1531 = vmatpush1.bf16.msra.mxu0 %v1319
    %1532 = vmatprep.subr.bf16.mxu0 %v1325
    %1533 = vmatpush1.bf16.msra.mxu0 %v1324
    %1534 = vmatprep.subr.bf16.mxu0 %v1330
    %1535 = vmatpush1.bf16.msra.mxu0 %v1329
    %1536 = vmatprep.subr.bf16.mxu0 %v1335
    %1537 = vmatpush1.bf16.msra.mxu0 %v1334
    %1538 = vmatprep.subr.bf16.mxu0 %v1340
    %1539 = vmatpush1.bf16.msra.mxu0 %v1339
    %1540 = vmatprep.subr.bf16.mxu0 %v1345
    %1541 = vmatpush1.bf16.msra.mxu0 %v1344
    %1542 = vmatprep.subr.bf16.mxu0 %v1350
    %1543 = vmatpush1.bf16.msra.mxu0 %v1349
    %1544 = vmatprep.subr.bf16.mxu0 %v1355
    %1545 = vmatpush1.bf16.msra.mxu0 %v1354
    %1546 = vmatprep.subr.bf16.mxu0 %v1360
    %1547 = vmatpush1.bf16.msra.mxu0 %v1359
    %1548 = vmatprep.subr.bf16.mxu0 %v1365
    %1549 = vmatpush1.bf16.msra.mxu0 %v1364
    %1550 = vmatprep.subr.bf16.mxu0 %v1370
    %1551 = vmatpush1.bf16.msra.mxu0 %v1369
    %1552 = vmatprep.subr.bf16.mxu0 %v1375
    %1553 = vmatpush1.bf16.msra.mxu0 %v1374
    %1554 = vmatprep.subr.bf16.mxu0 %v1380
    %1555 = vmatpush1.bf16.msra.mxu0 %v1379
    %1556 = vmatprep.mubr.bf16.mxu0 %v1300
    %1557 = vmatmul.mubr.bf16.gmra.mrb[0].mxu0 %v1299
    %v1558 = vpop.f32.mrb[0].mxu0
    %v1559 = vadd.f32 %v1507, %v1558
    %v1560 = vpop.f32.mrb[0].mxu0
    %v1561 = vadd.f32 %v1511, %v1560
    %v1562 = vpop.f32.mrb[0].mxu0
    %v1563 = vpop.f32.mrb[0].mxu0
    %1564 = vdwg.mxu0
    %1565 = vmatprep.subr.bf16.mxu0 %v1385
    %1566 = vmatpush1.bf16.msra.mxu0 %v1384
    %1567 = vmatprep.subr.bf16.mxu0 %v1390
    %1568 = vmatpush1.bf16.msra.mxu0 %v1389
    %1569 = vmatprep.subr.bf16.mxu0 %v1395
    %1570 = vmatpush1.bf16.msra.mxu0 %v1394
    %1571 = vmatprep.subr.bf16.mxu0 %v1400
    %1572 = vmatpush1.bf16.msra.mxu0 %v1399
    %1573 = vmatprep.subr.bf16.mxu0 %v1405
    %1574 = vmatpush1.bf16.msra.mxu0 %v1404
    %1575 = vmatprep.subr.bf16.mxu0 %v1410
    %1576 = vmatpush1.bf16.msra.mxu0 %v1409
    %1577 = vmatprep.subr.bf16.mxu0 %v1415
    %1578 = vmatpush1.bf16.msra.mxu0 %v1414
    %1579 = vmatprep.subr.bf16.mxu0 %v1420
    %1580 = vmatpush1.bf16.msra.mxu0 %v1419
    %1581 = vmatprep.subr.bf16.mxu0 %v1425
    %1582 = vmatpush1.bf16.msra.mxu0 %v1424
    %1583 = vmatprep.subr.bf16.mxu0 %v1430
    %1584 = vmatpush1.bf16.msra.mxu0 %v1429
    %1585 = vmatprep.subr.bf16.mxu0 %v1435
    %1586 = vmatpush1.bf16.msra.mxu0 %v1434
    %1587 = vmatprep.subr.bf16.mxu0 %v1440
    %1588 = vmatpush1.bf16.msra.mxu0 %v1439
    %1589 = vmatprep.subr.bf16.mxu0 %v1445
    %1590 = vmatpush1.bf16.msra.mxu0 %v1444
    %1591 = vmatprep.subr.bf16.mxu0 %v1450
    %1592 = vmatpush1.bf16.msra.mxu0 %v1449
    %1593 = vmatprep.subr.bf16.mxu0 %v1455
    %1594 = vmatpush1.bf16.msra.mxu0 %v1454
    %1595 = vmatprep.subr.bf16.mxu0 %v1460
    %1596 = vmatpush1.bf16.msra.mxu0 %v1459
    %1597 = vmatprep.mubr.bf16.mxu0 %v1302
    %1598 = vmatmul.mubr.bf16.gmra.mrb[0].mxu0 %v1301
    %v1599 = vpop.f32.mrb[0].mxu0
    %v1600 = vadd.f32 %v1559, %v1599
    %v1601 = vpop.f32.mrb[0].mxu0
    %v1602 = vadd.f32 %v1561, %v1601
    %v1603 = vpop.f32.mrb[0].mxu0
    %v1604 = vpop.f32.mrb[0].mxu0
    %1605 = vdwg.mxu0
    %1606 = vmatprep.subr.bf16.mxu0 %v1465
    %1607 = vmatpush1.bf16.msra.mxu0 %v1464
    %1608 = vmatprep.subr.bf16.mxu0 %v1470
    %1609 = vmatpush1.bf16.msra.mxu0 %v1469
    %1610 = vmatprep.subr.bf16.mxu0 %v1475
    %1611 = vmatpush1.bf16.msra.mxu0 %v1474
    %1612 = vmatprep.subr.bf16.mxu0 %v1480
    %1613 = vmatpush1.bf16.msra.mxu0 %v1479
    %1614 = vmatprep.subr.bf16.mxu0 %v1485
    %1615 = vmatpush1.bf16.msra.mxu0 %v1484
    %1616 = vmatprep.subr.bf16.mxu0 %v1490
    %1617 = vmatpush1.bf16.msra.mxu0 %v1489
    %1618 = vmatprep.subr.bf16.mxu0 %v1495
    %1619 = vmatpush1.bf16.msra.mxu0 %v1494
    %1620 = vmatprep.subr.bf16.mxu0 %v1500
    %1621 = vmatpush1.bf16.msra.mxu0 %v1499
    %1622 = vmatprep.subr.bf16.mxu0 0
    %1623 = vmatpush1.bf16.msra.mxu0 0
    %1624 = vmatprep.subr.bf16.mxu0 0
    %1625 = vmatpush1.bf16.msra.mxu0 0
    %1626 = vmatprep.subr.bf16.mxu0 0
    %1627 = vmatpush1.bf16.msra.mxu0 0
    %1628 = vmatprep.subr.bf16.mxu0 0
    %1629 = vmatpush1.bf16.msra.mxu0 0
    %1630 = vmatprep.subr.bf16.mxu0 0
    %1631 = vmatpush1.bf16.msra.mxu0 0
    %1632 = vmatprep.subr.bf16.mxu0 0
    %1633 = vmatpush1.bf16.msra.mxu0 0
    %1634 = vmatprep.subr.bf16.mxu0 0
    %1635 = vmatpush1.bf16.msra.mxu0 0
    %1636 = vmatprep.subr.bf16.mxu0 0
    %1637 = vmatpush1.bf16.msra.mxu0 0
    %1638 = vmatprep.mubr.bf16.mxu0 0
    %1639 = vmatmul.mubr.bf16.gmra.mrb[0].mxu0 %v1303
    %v1640 = vpop.f32.mrb[0].mxu0
    %v1641 = vadd.f32 %v1600, %v1640
    %v1642 = vpop.f32.mrb[0].mxu0
    %v1643 = vadd.f32 %v1602, %v1642
    %v1644 = vpop.f32.mrb[0].mxu0
    %v1645 = vpop.f32.mrb[0].mxu0
    %1646 = vdwg.mxu0
    %1647 = vmatprep.subr.bf16.mxu0 %v1307
    %1648 = vmatpush1.bf16.msra.mxu0 %v1306
    %1649 = vmatprep.subr.bf16.mxu0 %v1312
    %1650 = vmatpush1.bf16.msra.mxu0 %v1311
    %1651 = vmatprep.subr.bf16.mxu0 %v1317
    %1652 = vmatpush1.bf16.msra.mxu0 %v1316
    %1653 = vmatprep.subr.bf16.mxu0 %v1322
    %1654 = vmatpush1.bf16.msra.mxu0 %v1321
    %1655 = vmatprep.subr.bf16.mxu0 %v1327
    %1656 = vmatpush1.bf16.msra.mxu0 %v1326
    %1657 = vmatprep.subr.bf16.mxu0 %v1332
    %1658 = vmatpush1.bf16.msra.mxu0 %v1331
    %1659 = vmatprep.subr.bf16.mxu0 %v1337
    %1660 = vmatpush1.bf16.msra.mxu0 %v1336
    %1661 = vmatprep.subr.bf16.mxu0 %v1342
    %1662 = vmatpush1.bf16.msra.mxu0 %v1341
    %1663 = vmatprep.subr.bf16.mxu0 %v1347
    %1664 = vmatpush1.bf16.msra.mxu0 %v1346
    %1665 = vmatprep.subr.bf16.mxu0 %v1352
    %1666 = vmatpush1.bf16.msra.mxu0 %v1351
    %1667 = vmatprep.subr.bf16.mxu0 %v1357
    %1668 = vmatpush1.bf16.msra.mxu0 %v1356
    %1669 = vmatprep.subr.bf16.mxu0 %v1362
    %1670 = vmatpush1.bf16.msra.mxu0 %v1361
    %1671 = vmatprep.subr.bf16.mxu0 %v1367
    %1672 = vmatpush1.bf16.msra.mxu0 %v1366
    %1673 = vmatprep.subr.bf16.mxu0 %v1372
    %1674 = vmatpush1.bf16.msra.mxu0 %v1371
    %1675 = vmatprep.subr.bf16.mxu0 %v1377
    %1676 = vmatpush1.bf16.msra.mxu0 %v1376
    %1677 = vmatprep.subr.bf16.mxu0 %v1382
    %1678 = vmatpush1.bf16.msra.mxu0 %v1381
    %1679 = vmatprep.mubr.bf16.mxu0 %v1300
    %1680 = vmatmul.mubr.bf16.gmra.mrb[0].mxu0 %v1299
    %v1681 = vpop.f32.mrb[0].mxu0
    %v1682 = vadd.f32 %v1515, %v1681
    %v1683 = vpop.f32.mrb[0].mxu0
    %v1684 = vadd.f32 %v1519, %v1683
    %v1685 = vpop.f32.mrb[0].mxu0
    %v1686 = vpop.f32.mrb[0].mxu0
    %1687 = vdwg.mxu0
    %1688 = vmatprep.subr.bf16.mxu0 %v1387
    %1689 = vmatpush1.bf16.msra.mxu0 %v1386
    %1690 = vmatprep.subr.bf16.mxu0 %v1392
    %1691 = vmatpush1.bf16.msra.mxu0 %v1391
    %1692 = vmatprep.subr.bf16.mxu0 %v1397
    %1693 = vmatpush1.bf16.msra.mxu0 %v1396
    %1694 = vmatprep.subr.bf16.mxu0 %v1402
    %1695 = vmatpush1.bf16.msra.mxu0 %v1401
    %1696 = vmatprep.subr.bf16.mxu0 %v1407
    %1697 = vmatpush1.bf16.msra.mxu0 %v1406
    %1698 = vmatprep.subr.bf16.mxu0 %v1412
    %1699 = vmatpush1.bf16.msra.mxu0 %v1411
    %1700 = vmatprep.subr.bf16.mxu0 %v1417
    %1701 = vmatpush1.bf16.msra.mxu0 %v1416
    %1702 = vmatprep.subr.bf16.mxu0 %v1422
    %1703 = vmatpush1.bf16.msra.mxu0 %v1421
    %1704 = vmatprep.subr.bf16.mxu0 %v1427
    %1705 = vmatpush1.bf16.msra.mxu0 %v1426
    %1706 = vmatprep.subr.bf16.mxu0 %v1432
    %1707 = vmatpush1.bf16.msra.mxu0 %v1431
    %1708 = vmatprep.subr.bf16.mxu0 %v1437
    %1709 = vmatpush1.bf16.msra.mxu0 %v1436
    %1710 = vmatprep.subr.bf16.mxu0 %v1442
    %1711 = vmatpush1.bf16.msra.mxu0 %v1441
    %1712 = vmatprep.subr.bf16.mxu0 %v1447
    %1713 = vmatpush1.bf16.msra.mxu0 %v1446
    %1714 = vmatprep.subr.bf16.mxu0 %v1452
    %1715 = vmatpush1.bf16.msra.mxu0 %v1451
    %1716 = vmatprep.subr.bf16.mxu0 %v1457
    %1717 = vmatpush1.bf16.msra.mxu0 %v1456
    %1718 = vmatprep.subr.bf16.mxu0 %v1462
    %1719 = vmatpush1.bf16.msra.mxu0 %v1461
    %1720 = vmatprep.mubr.bf16.mxu0 %v1302
    %1721 = vmatmul.mubr.bf16.gmra.mrb[0].mxu0 %v1301
    %v1722 = vpop.f32.mrb[0].mxu0
    %v1723 = vadd.f32 %v1682, %v1722
    %v1724 = vpop.f32.mrb[0].mxu0
    %v1725 = vadd.f32 %v1684, %v1724
    %v1726 = vpop.f32.mrb[0].mxu0
    %v1727 = vpop.f32.mrb[0].mxu0
    %1728 = vdwg.mxu0
    %1729 = vmatprep.subr.bf16.mxu0 %v1467
    %1730 = vmatpush1.bf16.msra.mxu0 %v1466
    %1731 = vmatprep.subr.bf16.mxu0 %v1472
    %1732 = vmatpush1.bf16.msra.mxu0 %v1471
    %1733 = vmatprep.subr.bf16.mxu0 %v1477
    %1734 = vmatpush1.bf16.msra.mxu0 %v1476
    %1735 = vmatprep.subr.bf16.mxu0 %v1482
    %1736 = vmatpush1.bf16.msra.mxu0 %v1481
    %1737 = vmatprep.subr.bf16.mxu0 %v1487
    %1738 = vmatpush1.bf16.msra.mxu0 %v1486
    %1739 = vmatprep.subr.bf16.mxu0 %v1492
    %1740 = vmatpush1.bf16.msra.mxu0 %v1491
    %1741 = vmatprep.subr.bf16.mxu0 %v1497
    %1742 = vmatpush1.bf16.msra.mxu0 %v1496
    %1743 = vmatprep.subr.bf16.mxu0 %v1502
    %1744 = vmatpush1.bf16.msra.mxu0 %v1501
    %1745 = vmatprep.subr.bf16.mxu0 0
    %1746 = vmatpush1.bf16.msra.mxu0 0
    %1747 = vmatprep.subr.bf16.mxu0 0
    %1748 = vmatpush1.bf16.msra.mxu0 0
    %1749 = vmatprep.subr.bf16.mxu0 0
    %1750 = vmatpush1.bf16.msra.mxu0 0
    %1751 = vmatprep.subr.bf16.mxu0 0
    %1752 = vmatpush1.bf16.msra.mxu0 0
    %1753 = vmatprep.subr.bf16.mxu0 0
    %1754 = vmatpush1.bf16.msra.mxu0 0
    %1755 = vmatprep.subr.bf16.mxu0 0
    %1756 = vmatpush1.bf16.msra.mxu0 0
    %1757 = vmatprep.subr.bf16.mxu0 0
    %1758 = vmatpush1.bf16.msra.mxu0 0
    %1759 = vmatprep.subr.bf16.mxu0 0
    %1760 = vmatpush1.bf16.msra.mxu0 0
    %1761 = vmatprep.mubr.bf16.mxu0 0
    %1762 = vmatmul.mubr.bf16.gmra.mrb[0].mxu0 %v1303
    %v1763 = vpop.f32.mrb[0].mxu0
    %v1764 = vadd.f32 %v1723, %v1763
    %v1765 = vpop.f32.mrb[0].mxu0
    %v1766 = vadd.f32 %v1725, %v1765
    %v1767 = vpop.f32.mrb[0].mxu0
    %v1768 = vpop.f32.mrb[0].mxu0
    %1769 = vdwg.mxu0
    %1770 = vmatprep.subr.bf16.mxu0 0
    %1771 = vmatpush1.bf16.msra.mxu0 %v1308
    %1772 = vmatprep.subr.bf16.mxu0 0
    %1773 = vmatpush1.bf16.msra.mxu0 %v1313
    %1774 = vmatprep.subr.bf16.mxu0 0
    %1775 = vmatpush1.bf16.msra.mxu0 %v1318
    %1776 = vmatprep.subr.bf16.mxu0 0
    %1777 = vmatpush1.bf16.msra.mxu0 %v1323
    %1778 = vmatprep.subr.bf16.mxu0 0
    %1779 = vmatpush1.bf16.msra.mxu0 %v1328
    %1780 = vmatprep.subr.bf16.mxu0 0
    %1781 = vmatpush1.bf16.msra.mxu0 %v1333
    %1782 = vmatprep.subr.bf16.mxu0 0
    %1783 = vmatpush1.bf16.msra.mxu0 %v1338
    %1784 = vmatprep.subr.bf16.mxu0 0
    %1785 = vmatpush1.bf16.msra.mxu0 %v1343
    %1786 = vmatprep.subr.bf16.mxu0 0
    %1787 = vmatpush1.bf16.msra.mxu0 %v1348
    %1788 = vmatprep.subr.bf16.mxu0 0
    %1789 = vmatpush1.bf16.msra.mxu0 %v1353
    %1790 = vmatprep.subr.bf16.mxu0 0
    %1791 = vmatpush1.bf16.msra.mxu0 %v1358
    %1792 = vmatprep.subr.bf16.mxu0 0
    %1793 = vmatpush1.bf16.msra.mxu0 %v1363
    %1794 = vmatprep.subr.bf16.mxu0 0
    %1795 = vmatpush1.bf16.msra.mxu0 %v1368
    %1796 = vmatprep.subr.bf16.mxu0 0
    %1797 = vmatpush1.bf16.msra.mxu0 %v1373
    %1798 = vmatprep.subr.bf16.mxu0 0
    %1799 = vmatpush1.bf16.msra.mxu0 %v1378
    %1800 = vmatprep.subr.bf16.mxu0 0
    %1801 = vmatpush1.bf16.msra.mxu0 %v1383
    %1802 = vmatprep.mubr.bf16.mxu0 %v1300
    %1803 = vmatmul.mubr.bf16.gmra.mrb[0].mxu0 %v1299
    %v1804 = vpop.f32.mrb[0].mxu0
    %v1805 = vadd.f32 %v1523, %v1804
    %v1806 = vpop.f32.mrb[0].mxu0
    %v1807 = vpop.f32.mrb[0].mxu0
    %v1808 = vpop.f32.mrb[0].mxu0
    %1809 = vdwg.mxu0
    %1810 = vmatprep.subr.bf16.mxu0 0
    %1811 = vmatpush1.bf16.msra.mxu0 %v1388
    %1812 = vmatprep.subr.bf16.mxu0 0
    %1813 = vmatpush1.bf16.msra.mxu0 %v1393
    %1814 = vmatprep.subr.bf16.mxu0 0
    %1815 = vmatpush1.bf16.msra.mxu0 %v1398
    %1816 = vmatprep.subr.bf16.mxu0 0
    %1817 = vmatpush1.bf16.msra.mxu0 %v1403
    %1818 = vmatprep.subr.bf16.mxu0 0
    %1819 = vmatpush1.bf16.msra.mxu0 %v1408
    %1820 = vmatprep.subr.bf16.mxu0 0
    %1821 = vmatpush1.bf16.msra.mxu0 %v1413
    %1822 = vmatprep.subr.bf16.mxu0 0
    %1823 = vmatpush1.bf16.msra.mxu0 %v1418
    %1824 = vmatprep.subr.bf16.mxu0 0
    %1825 = vmatpush1.bf16.msra.mxu0 %v1423
    %1826 = vmatprep.subr.bf16.mxu0 0
    %1827 = vmatpush1.bf16.msra.mxu0 %v1428
    %1828 = vmatprep.subr.bf16.mxu0 0
    %1829 = vmatpush1.bf16.msra.mxu0 %v1433
    %1830 = vmatprep.subr.bf16.mxu0 0
    %1831 = vmatpush1.bf16.msra.mxu0 %v1438
    %1832 = vmatprep.subr.bf16.mxu0 0
    %1833 = vmatpush1.bf16.msra.mxu0 %v1443
    %1834 = vmatprep.subr.bf16.mxu0 0
    %1835 = vmatpush1.bf16.msra.mxu0 %v1448
    %1836 = vmatprep.subr.bf16.mxu0 0
    %1837 = vmatpush1.bf16.msra.mxu0 %v1453
    %1838 = vmatprep.subr.bf16.mxu0 0
    %1839 = vmatpush1.bf16.msra.mxu0 %v1458
    %1840 = vmatprep.subr.bf16.mxu0 0
    %1841 = vmatpush1.bf16.msra.mxu0 %v1463
    %1842 = vmatprep.mubr.bf16.mxu0 %v1302
    %1843 = vmatmul.mubr.bf16.gmra.mrb[0].mxu0 %v1301
    %v1844 = vpop.f32.mrb[0].mxu0
    %v1845 = vadd.f32 %v1805, %v1844
    %v1846 = vpop.f32.mrb[0].mxu0
    %v1847 = vpop.f32.mrb[0].mxu0
    %v1848 = vpop.f32.mrb[0].mxu0
    %1849 = vdwg.mxu0
    %1850 = vmatprep.subr.bf16.mxu0 0
    %1851 = vmatpush1.bf16.msra.mxu0 %v1468
    %1852 = vmatprep.subr.bf16.mxu0 0
    %1853 = vmatpush1.bf16.msra.mxu0 %v1473
    %1854 = vmatprep.subr.bf16.mxu0 0
    %1855 = vmatpush1.bf16.msra.mxu0 %v1478
    %1856 = vmatprep.subr.bf16.mxu0 0
    %1857 = vmatpush1.bf16.msra.mxu0 %v1483
    %1858 = vmatprep.subr.bf16.mxu0 0
    %1859 = vmatpush1.bf16.msra.mxu0 %v1488
    %1860 = vmatprep.subr.bf16.mxu0 0
    %1861 = vmatpush1.bf16.msra.mxu0 %v1493
    %1862 = vmatprep.subr.bf16.mxu0 0
    %1863 = vmatpush1.bf16.msra.mxu0 %v1498
    %1864 = vmatprep.subr.bf16.mxu0 0
    %1865 = vmatpush1.bf16.msra.mxu0 %v1503
    %1866 = vmatprep.subr.bf16.mxu0 0
    %1867 = vmatpush1.bf16.msra.mxu0 0
    %1868 = vmatprep.subr.bf16.mxu0 0
    %1869 = vmatpush1.bf16.msra.mxu0 0
    %1870 = vmatprep.subr.bf16.mxu0 0
    %1871 = vmatpush1.bf16.msra.mxu0 0
    %1872 = vmatprep.subr.bf16.mxu0 0
    %1873 = vmatpush1.bf16.msra.mxu0 0
    %1874 = vmatprep.subr.bf16.mxu0 0
    %1875 = vmatpush1.bf16.msra.mxu0 0
    %1876 = vmatprep.subr.bf16.mxu0 0
    %1877 = vmatpush1.bf16.msra.mxu0 0
    %1878 = vmatprep.subr.bf16.mxu0 0
    %1879 = vmatpush1.bf16.msra.mxu0 0
    %1880 = vmatprep.subr.bf16.mxu0 0
    %1881 = vmatpush1.bf16.msra.mxu0 0
    %1882 = vmatprep.mubr.bf16.mxu0 0
    %1883 = vmatmul.mubr.bf16.gmra.mrb[0].mxu0 %v1303
    %v1884 = vpop.f32.mrb[0].mxu0
    %v1885 = vadd.f32 %v1845, %v1884
    %v1886 = vpop.f32.mrb[0].mxu0
    %v1887 = vpop.f32.mrb[0].mxu0
    %v1888 = vpop.f32.mrb[0].mxu0
    %1889 = vdwg.mxu0
    %v1890 = vmax.f32 %v1641, 0.0
    %v1891 = vmax.f32 %v1643, 0.0
    %v1892 = vmax.f32 %v1764, 0.0
    %v1893 = vmax.f32 %v1766, 0.0
    %v1894 = vmax.f32 %v1885, 0.0
    %v1895 = vrot.slane %v1890, 4
    %v1896 = vadd.f32 %v1890, %v1895
    %v1897 = vrot.slane %v1896, 2
    %v1898 = vadd.f32 %v1896, %v1897
    %v1899 = vrot.slane %v1898, 1
    %v1900 = vadd.f32 %v1898, %v1899
    %v1901 = vrot.slane %v1891, 4
    %v1902 = vadd.f32 %v1891, %v1901
    %v1903 = vrot.slane %v1902, 2
    %v1904 = vadd.f32 %v1902, %v1903
    %v1905 = vrot.slane %v1904, 1
    %v1906 = vadd.f32 %v1904, %v1905
    %v1907 = vrot.slane %v1892, 4
    %v1908 = vadd.f32 %v1892, %v1907
    %v1909 = vrot.slane %v1908, 2
    %v1910 = vadd.f32 %v1908, %v1909
    %v1911 = vrot.slane %v1910, 1
    %v1912 = vadd.f32 %v1910, %v1911
    %v1913 = vrot.slane %v1893, 4
    %v1914 = vadd.f32 %v1893, %v1913
    %v1915 = vrot.slane %v1914, 2
    %v1916 = vadd.f32 %v1914, %v1915
    %v1917 = vrot.slane %v1916, 1
    %v1918 = vadd.f32 %v1916, %v1917
    %v1919 = vrot.slane %v1894, 4
    %v1920 = vadd.f32 %v1894, %v1919
    %v1921 = vrot.slane %v1920, 2
    %v1922 = vadd.f32 %v1920, %v1921
    %v1923 = vrot.slane %v1922, 1
    %v1924 = vadd.f32 %v1922, %v1923
    %v1925 = vmul.f32 %v1900, %v1164
    %v1926 = vmul.f32 %v1906, %v1164
    %v1927 = vmul.f32 %v1912, %v1164
    %v1928 = vmul.f32 %v1918, %v1164
    %v1929 = vmul.f32 %v1924, %v1164
    %v1930 = vmul.f32 %v1890, %v1890
    %v1931 = vmul.f32 %v1891, %v1891
    %v1932 = vmul.f32 %v1892, %v1892
    %v1933 = vmul.f32 %v1893, %v1893
    %v1934 = vmul.f32 %v1894, %v1894
    %v1935 = vrot.slane %v1930, 4
    %v1936 = vadd.f32 %v1930, %v1935
    %v1937 = vrot.slane %v1936, 2
    %v1938 = vadd.f32 %v1936, %v1937
    %v1939 = vrot.slane %v1938, 1
    %v1940 = vadd.f32 %v1938, %v1939
    %v1941 = vrot.slane %v1931, 4
    %v1942 = vadd.f32 %v1931, %v1941
    %v1943 = vrot.slane %v1942, 2
    %v1944 = vadd.f32 %v1942, %v1943
    %v1945 = vrot.slane %v1944, 1
    %v1946 = vadd.f32 %v1944, %v1945
    %v1947 = vrot.slane %v1932, 4
    %v1948 = vadd.f32 %v1932, %v1947
    %v1949 = vrot.slane %v1948, 2
    %v1950 = vadd.f32 %v1948, %v1949
    %v1951 = vrot.slane %v1950, 1
    %v1952 = vadd.f32 %v1950, %v1951
    %v1953 = vrot.slane %v1933, 4
    %v1954 = vadd.f32 %v1933, %v1953
    %v1955 = vrot.slane %v1954, 2
    %v1956 = vadd.f32 %v1954, %v1955
    %v1957 = vrot.slane %v1956, 1
    %v1958 = vadd.f32 %v1956, %v1957
    %v1959 = vrot.slane %v1934, 4
    %v1960 = vadd.f32 %v1934, %v1959
    %v1961 = vrot.slane %v1960, 2
    %v1962 = vadd.f32 %v1960, %v1961
    %v1963 = vrot.slane %v1962, 1
    %v1964 = vadd.f32 %v1962, %v1963
    %v1965 = vmul.f32 %v1940, %v1164
    %v1966 = vmul.f32 %v1946, %v1164
    %v1967 = vmul.f32 %v1952, %v1164
    %v1968 = vmul.f32 %v1958, %v1164
    %v1969 = vmul.f32 %v1964, %v1164
    %v1970 = vmul.f32 %v1925, %v1925
    %v1971 = vmul.f32 %v1926, %v1926
    %v1972 = vmul.f32 %v1927, %v1927
    %v1973 = vmul.f32 %v1928, %v1928
    %v1974 = vmul.f32 %v1929, %v1929
    %v1975 = vsub.f32 %v1965, %v1970
    %v1976 = vsub.f32 %v1966, %v1971
    %v1977 = vsub.f32 %v1967, %v1972
    %v1978 = vsub.f32 %v1968, %v1973
    %v1979 = vsub.f32 %v1969, %v1974
    %v1980 = vmax.f32 %v1975, 0.0
    %v1981 = vmax.f32 %v1976, 0.0
    %v1982 = vmax.f32 %v1977, 0.0
    %v1983 = vmax.f32 %v1978, 0.0
    %v1984 = vmax.f32 %v1979, 0.0
    %v1985 = vsub.f32 %v1890, %v1925
    %v1986 = vsub.f32 %v1891, %v1926
    %v1987 = vsub.f32 %v1892, %v1927
    %v1988 = vsub.f32 %v1893, %v1928
    %v1989 = vsub.f32 %v1894, %v1929
    %v1990 = vadd.f32 %v1980, 1e-05
    %v1991 = vadd.f32 %v1981, 1e-05
    %v1992 = vadd.f32 %v1982, 1e-05
    %v1993 = vadd.f32 %v1983, 1e-05
    %v1994 = vadd.f32 %v1984, 1e-05
    %v1995 = vrsqrt.pop %v1990
    %v1996 = vrsqrt.pop %v1991
    %v1997 = vrsqrt.pop %v1992
    %v1998 = vrsqrt.pop %v1993
    %v1999 = vrsqrt.pop %v1994
    %v2000 = vmul.f32 %v1985, %v1995
    %v2001 = vmul.f32 %v1986, %v1996
    %v2002 = vmul.f32 %v1987, %v1997
    %v2003 = vmul.f32 %v1988, %v1998
    %v2004 = vmul.f32 %v1989, %v1999
    %v2005 = vlaneseq
    %v2006 = vshrl.u32 %v2005, 7
    %v2007 = vsub.s32 4, %v2006
    %v2008 = vrot.slane %v81, %v2007
    %v2009 = vlaneseq
    %v2010 = vshrl.u32 %v2009, 7
    %v2011 = vsub.s32 4, %v2010
    %v2012 = vrot.slane %v82, %v2011
    %v2013 = vlaneseq
    %v2014 = vshrl.u32 %v2013, 7
    %v2015 = vsub.s32 4, %v2014
    %v2016 = vrot.slane %v83, %v2015
    %v2017 = vlaneseq
    %v2018 = vshrl.u32 %v2017, 7
    %v2019 = vsub.s32 4, %v2018
    %v2020 = vrot.slane %v84, %v2019
    %v2021 = vlaneseq
    %v2022 = vshrl.u32 %v2021, 7
    %v2023 = vsub.s32 4, %v2022
    %v2024 = vrot.slane %v85, %v2023
    %v2025 = vmul.f32 %v2000, %v2008
    %v2026 = vmul.f32 %v2001, %v2012
    %v2027 = vmul.f32 %v2002, %v2016
    %v2028 = vmul.f32 %v2003, %v2020
    %v2029 = vmul.f32 %v2004, %v2024
    %v2030 = vlaneseq
    %v2031 = vshrl.u32 %v2030, 7
    %v2032 = vsub.s32 5, %v2031
    %v2033 = vrot.slane %v81, %v2032
    %v2034 = vlaneseq
    %v2035 = vshrl.u32 %v2034, 7
    %v2036 = vsub.s32 5, %v2035
    %v2037 = vrot.slane %v82, %v2036
    %v2038 = vlaneseq
    %v2039 = vshrl.u32 %v2038, 7
    %v2040 = vsub.s32 5, %v2039
    %v2041 = vrot.slane %v83, %v2040
    %v2042 = vlaneseq
    %v2043 = vshrl.u32 %v2042, 7
    %v2044 = vsub.s32 5, %v2043
    %v2045 = vrot.slane %v84, %v2044
    %v2046 = vlaneseq
    %v2047 = vshrl.u32 %v2046, 7
    %v2048 = vsub.s32 5, %v2047
    %v2049 = vrot.slane %v85, %v2048
    %v2050 = vadd.f32 %v2025, %v2033
    %v2051 = vadd.f32 %v2026, %v2037
    %v2052 = vadd.f32 %v2027, %v2041
    %v2053 = vadd.f32 %v2028, %v2045
    %v2054 = vadd.f32 %v2029, %v2049
    %s2055 = smul.u32 %s1295, 1
    %s2056 = sshll.u32 %s2055, 4
    %2057 = dma.done %s67, %s2056
    %v2058 = vpack.c.bf16 %v2050, %v2050
    %v2059 = vpack.c.bf16 %v2051, %v2051
    %v2060 = vpack.c.bf16 %v2052, %v2052
    %v2061 = vpack.c.bf16 %v2053, %v2053
    %v2062 = vpack.c.bf16 %v2054, %v2054
    %v2063 = vld [vmem:[#allocation3] sm:$0xff]
    %v2064 = vld [vmem:[#allocation3 + $0x8] sm:$0xff]
    %v2065 = vld [vmem:[#allocation3 + $0x10] sm:$0xff]
    %v2066 = vld [vmem:[#allocation3 + $0x18] sm:$0xff]
    %v2067 = vld [vmem:[#allocation3 + $0x20] sm:$0xff]
    %v2068 = vld [vmem:[#allocation3 + $0x28] sm:$0xff]
    %v2069 = vld [vmem:[#allocation3 + $0x30] sm:$0xff]
    %v2070 = vld [vmem:[#allocation3 + $0x38] sm:$0xff]
    %v2071 = vld [vmem:[#allocation3 + $0x40] sm:$0xff]
    %v2072 = vld [vmem:[#allocation3 + $0x48] sm:$0xff]
    %v2073 = vld [vmem:[#allocation3 + $0x50] sm:$0xff]
    %v2074 = vld [vmem:[#allocation3 + $0x58] sm:$0xff]
    %v2075 = vld [vmem:[#allocation3 + $0x60] sm:$0xff]
    %v2076 = vld [vmem:[#allocation3 + $0x68] sm:$0xff]
    %v2077 = vld [vmem:[#allocation3 + $0x70] sm:$0xff]
    %v2078 = vld [vmem:[#allocation3 + $0x78] sm:$0xff]
    %v2079 = vld [vmem:[#allocation3 + $0x80] sm:$0xff]
    %v2080 = vld [vmem:[#allocation3 + $0x88] sm:$0xff]
    %v2081 = vld [vmem:[#allocation3 + $0x90] sm:$0xff]
    %v2082 = vld [vmem:[#allocation3 + $0x98] sm:$0xff]
    %v2083 = vld [vmem:[#allocation3 + $0xa0] sm:$0xff]
    %v2084 = vld [vmem:[#allocation3 + $0xa8] sm:$0xff]
    %v2085 = vld [vmem:[#allocation3 + $0xb0] sm:$0xff]
    %v2086 = vld [vmem:[#allocation3 + $0xb8] sm:$0xff]
    %v2087 = vld [vmem:[#allocation3 + $0xc0] sm:$0xff]
    %v2088 = vld [vmem:[#allocation3 + $0xc8] sm:$0xff]
    %v2089 = vld [vmem:[#allocation3 + $0xd0] sm:$0xff]
    %v2090 = vld [vmem:[#allocation3 + $0xd8] sm:$0xff]
    %v2091 = vld [vmem:[#allocation3 + $0xe0] sm:$0xff]
    %v2092 = vld [vmem:[#allocation3 + $0xe8] sm:$0xff]
    %v2093 = vld [vmem:[#allocation3 + $0xf0] sm:$0xff]
    %v2094 = vld [vmem:[#allocation3 + $0xf8] sm:$0xff]
    %v2095 = vld [vmem:[#allocation3 + $0x100] sm:$0xff]
    %v2096 = vld [vmem:[#allocation3 + $0x108] sm:$0xff]
    %v2097 = vld [vmem:[#allocation3 + $0x110] sm:$0xff]
    %v2098 = vld [vmem:[#allocation3 + $0x118] sm:$0xff]
    %v2099 = vld [vmem:[#allocation3 + $0x120] sm:$0xff]
    %v2100 = vld [vmem:[#allocation3 + $0x128] sm:$0xff]
    %v2101 = vld [vmem:[#allocation3 + $0x130] sm:$0xff]
    %v2102 = vld [vmem:[#allocation3 + $0x138] sm:$0xff]
    %v2103 = vlaneseq
    %v2104 = vshrl.u32 %v2103, 7
    %v2105 = vsub.s32 6, %v2104
    %v2106 = vrot.slane %v81, %v2105
    %2107 = vmatprep.subr.bf16.mxu0 0
    %2108 = vmatpush1.bf16.msra.mxu0 %v2063
    %2109 = vmatprep.subr.bf16.mxu0 0
    %2110 = vmatpush1.bf16.msra.mxu0 %v2064
    %2111 = vmatprep.subr.bf16.mxu0 0
    %2112 = vmatpush1.bf16.msra.mxu0 %v2065
    %2113 = vmatprep.subr.bf16.mxu0 0
    %2114 = vmatpush1.bf16.msra.mxu0 %v2066
    %2115 = vmatprep.subr.bf16.mxu0 0
    %2116 = vmatpush1.bf16.msra.mxu0 %v2067
    %2117 = vmatprep.subr.bf16.mxu0 0
    %2118 = vmatpush1.bf16.msra.mxu0 %v2068
    %2119 = vmatprep.subr.bf16.mxu0 0
    %2120 = vmatpush1.bf16.msra.mxu0 %v2069
    %2121 = vmatprep.subr.bf16.mxu0 0
    %2122 = vmatpush1.bf16.msra.mxu0 %v2070
    %2123 = vmatprep.subr.bf16.mxu0 0
    %2124 = vmatpush1.bf16.msra.mxu0 %v2071
    %2125 = vmatprep.subr.bf16.mxu0 0
    %2126 = vmatpush1.bf16.msra.mxu0 %v2072
    %2127 = vmatprep.subr.bf16.mxu0 0
    %2128 = vmatpush1.bf16.msra.mxu0 %v2073
    %2129 = vmatprep.subr.bf16.mxu0 0
    %2130 = vmatpush1.bf16.msra.mxu0 %v2074
    %2131 = vmatprep.subr.bf16.mxu0 0
    %2132 = vmatpush1.bf16.msra.mxu0 %v2075
    %2133 = vmatprep.subr.bf16.mxu0 0
    %2134 = vmatpush1.bf16.msra.mxu0 %v2076
    %2135 = vmatprep.subr.bf16.mxu0 0
    %2136 = vmatpush1.bf16.msra.mxu0 %v2077
    %2137 = vmatprep.subr.bf16.mxu0 0
    %2138 = vmatpush1.bf16.msra.mxu0 %v2078
    %2139 = vmatprep.mubr.bf16.mxu0 %v2059
    %2140 = vmatmul.mubr.bf16.gmra.mrb[0].mxu0 %v2058
    %v2141 = vpop.f32.mrb[0].mxu0
    %v2142 = vadd.f32 %v2106, %v2141
    %v2143 = vpop.f32.mrb[0].mxu0
    %v2144 = vpop.f32.mrb[0].mxu0
    %v2145 = vpop.f32.mrb[0].mxu0
    %2146 = vdwg.mxu0
    %2147 = vmatprep.subr.bf16.mxu0 0
    %2148 = vmatpush1.bf16.msra.mxu0 %v2079
    %2149 = vmatprep.subr.bf16.mxu0 0
    %2150 = vmatpush1.bf16.msra.mxu0 %v2080
    %2151 = vmatprep.subr.bf16.mxu0 0
    %2152 = vmatpush1.bf16.msra.mxu0 %v2081
    %2153 = vmatprep.subr.bf16.mxu0 0
    %2154 = vmatpush1.bf16.msra.mxu0 %v2082
    %2155 = vmatprep.subr.bf16.mxu0 0
    %2156 = vmatpush1.bf16.msra.mxu0 %v2083
    %2157 = vmatprep.subr.bf16.mxu0 0
    %2158 = vmatpush1.bf16.msra.mxu0 %v2084
    %2159 = vmatprep.subr.bf16.mxu0 0
    %2160 = vmatpush1.bf16.msra.mxu0 %v2085
    %2161 = vmatprep.subr.bf16.mxu0 0
    %2162 = vmatpush1.bf16.msra.mxu0 %v2086
    %2163 = vmatprep.subr.bf16.mxu0 0
    %2164 = vmatpush1.bf16.msra.mxu0 %v2087
    %2165 = vmatprep.subr.bf16.mxu0 0
    %2166 = vmatpush1.bf16.msra.mxu0 %v2088
    %2167 = vmatprep.subr.bf16.mxu0 0
    %2168 = vmatpush1.bf16.msra.mxu0 %v2089
    %2169 = vmatprep.subr.bf16.mxu0 0
    %2170 = vmatpush1.bf16.msra.mxu0 %v2090
    %2171 = vmatprep.subr.bf16.mxu0 0
    %2172 = vmatpush1.bf16.msra.mxu0 %v2091
    %2173 = vmatprep.subr.bf16.mxu0 0
    %2174 = vmatpush1.bf16.msra.mxu0 %v2092
    %2175 = vmatprep.subr.bf16.mxu0 0
    %2176 = vmatpush1.bf16.msra.mxu0 %v2093
    %2177 = vmatprep.subr.bf16.mxu0 0
    %2178 = vmatpush1.bf16.msra.mxu0 %v2094
    %2179 = vmatprep.mubr.bf16.mxu0 %v2061
    %2180 = vmatmul.mubr.bf16.gmra.mrb[0].mxu0 %v2060
    %v2181 = vpop.f32.mrb[0].mxu0
    %v2182 = vadd.f32 %v2142, %v2181
    %v2183 = vpop.f32.mrb[0].mxu0
    %v2184 = vpop.f32.mrb[0].mxu0
    %v2185 = vpop.f32.mrb[0].mxu0
    %2186 = vdwg.mxu0
    %2187 = vmatprep.subr.bf16.mxu0 0
    %2188 = vmatpush1.bf16.msra.mxu0 %v2095
    %2189 = vmatprep.subr.bf16.mxu0 0
    %2190 = vmatpush1.bf16.msra.mxu0 %v2096
    %2191 = vmatprep.subr.bf16.mxu0 0
    %2192 = vmatpush1.bf16.msra.mxu0 %v2097
    %2193 = vmatprep.subr.bf16.mxu0 0
    %2194 = vmatpush1.bf16.msra.mxu0 %v2098
    %2195 = vmatprep.subr.bf16.mxu0 0
    %2196 = vmatpush1.bf16.msra.mxu0 %v2099
    %2197 = vmatprep.subr.bf16.mxu0 0
    %2198 = vmatpush1.bf16.msra.mxu0 %v2100
    %2199 = vmatprep.subr.bf16.mxu0 0
    %2200 = vmatpush1.bf16.msra.mxu0 %v2101
    %2201 = vmatprep.subr.bf16.mxu0 0
    %2202 = vmatpush1.bf16.msra.mxu0 %v2102
    %2203 = vmatprep.subr.bf16.mxu0 0
    %2204 = vmatpush1.bf16.msra.mxu0 0
    %2205 = vmatprep.subr.bf16.mxu0 0
    %2206 = vmatpush1.bf16.msra.mxu0 0
    %2207 = vmatprep.subr.bf16.mxu0 0
    %2208 = vmatpush1.bf16.msra.mxu0 0
    %2209 = vmatprep.subr.bf16.mxu0 0
    %2210 = vmatpush1.bf16.msra.mxu0 0
    %2211 = vmatprep.subr.bf16.mxu0 0
    %2212 = vmatpush1.bf16.msra.mxu0 0
    %2213 = vmatprep.subr.bf16.mxu0 0
    %2214 = vmatpush1.bf16.msra.mxu0 0
    %2215 = vmatprep.subr.bf16.mxu0 0
    %2216 = vmatpush1.bf16.msra.mxu0 0
    %2217 = vmatprep.subr.bf16.mxu0 0
    %2218 = vmatpush1.bf16.msra.mxu0 0
    %2219 = vmatprep.mubr.bf16.mxu0 0
    %2220 = vmatmul.mubr.bf16.gmra.mrb[0].mxu0 %v2062
    %v2221 = vpop.f32.mrb[0].mxu0
    %v2222 = vadd.f32 %v2182, %v2221
    %v2223 = vpop.f32.mrb[0].mxu0
    %v2224 = vpop.f32.mrb[0].mxu0
    %v2225 = vpop.f32.mrb[0].mxu0
    %2226 = vdwg.mxu0
    %2227 = vst [vmem:[#allocation8] sm:$0xff] %v2222
    // Predicated region
    $region22: #{mlp_forward.1} parent=1 // pred_check
      _
    $region23: #{mlp_forward.1} parent=1 // pred_check_branch
      %2229 = sbr.rel (0) target = $region25
    $region24: #{mlp_forward.1} parent=1 // pred_region
      %s2231 = ssub.s32 128, 128
      %2232 = vsyncadd [#allocation7], %s2231
      %s2234 = sshll.u32 [#allocation8], 4
      %s2235 = int_to_ptr.vmem [resolvable:$true] %s2234
      %2237 = dma.vmem_to_hbm [thread:$0]  %s2235, 128, %s5, [#allocation7]
    $region25: #{mlp_forward.1} parent=1 // pred_fallthru
      _
    // Predicated region
    $region26: #{mlp_forward.1} parent=1 // pred_check
      _
    $region27: #{mlp_forward.1} parent=1 // pred_check_branch
      %2239 = sbr.rel (0) target = $region29
    $region28: #{mlp_forward.1} parent=1 // pred_region
      %2240 = dma.done [#allocation7], 128
    $region29: #{mlp_forward.1} parent=1 // pred_fallthru
      _
    %2241 = vsyncpa [#allocation6], 1
    %2242 = vsyncpa [#allocation7], 1
  %2243 = vsyncmov [#allocation4]
  %s2244 = vpop.sfrf %2243
  %p2245 = scmp.eq.s32.totalorder %s2244, 0
  %p2246 = pneg %p2245
  %2248 = shalt.err (%p2246)
  %s2249 = scalar_lea.sflag [#allocation4], 1
  %2250 = vsyncmov %s2249
  %s2251 = vpop.sfrf %2250
  %p2252 = scmp.eq.s32.totalorder %s2251, 0
  %p2253 = pneg %p2252
  %2255 = shalt.err (%p2253)

</llo_original>
